<compile_context>
chip_gen: v5e
topology: v5e:2x2
jax: 0.10.0
libtpu: 0.0.40
codegen_flags: <defaults>
</compile_context>

<pallas_src>
import numpy as np
import jax
import jax.numpy as jnp
from jax.experimental import pallas as pl
from jax.experimental.pallas import tpu as pltpu

# ----------------------------- config (params['hlayer'] = [4, 1, 32, 2]) -----
N_IN = 4             # n_input  (h, delt_q, z, dt -- torch cat order)
N_OUT = 1            # n_output
H = 32               # n_h
L = 2                # Num_Layer
N_HID_F = 2 * L - 1  # hidden 32x32 layers after folding: enc[1:], dec0∘K, dec[1:]
SUB = 256            # compute sub-tile (lanes); (H, SUB) f32 hidden = 8 vregs
MAX_SUB_PER_STEP = 4 # up to 1024 lanes per grid step (amortizes step overhead)

FOLDED_KEYS = ("w0", "b0", "w_hid", "b_hid", "w_out", "b_out")
_HIGHEST = jax.lax.Precision.HIGHEST   # only used by the pure-JAX reference


# ----------------------------- 3-pass f32 matmul helpers ---------------------
def _split_bf16(a):
    hi = a.astype(jnp.bfloat16)
    lo = (a - hi.astype(jnp.float32)).astype(jnp.bfloat16)
    return hi, lo


def _dot3(w_hi, w_lo, x):
    """~Precision.HIGH f32 matmul as 3 native bf16 MXU passes, f32 accumulation.
    (Mosaic supports only DEFAULT/HIGHEST; HIGHEST would be ~6 MXU passes.)"""
    x_hi, x_lo = _split_bf16(x)
    acc = jnp.dot(w_hi, x_hi, preferred_element_type=jnp.float32)
    acc = acc + jnp.dot(w_hi, x_lo, preferred_element_type=jnp.float32)
    acc = acc + jnp.dot(w_lo, x_hi, preferred_element_type=jnp.float32)
    return acc


# ----------------------------- the Pallas kernel -----------------------------
def meta_surrogate_h_kernel(
    x_ref,       # (2*N_IN, BT)  rows 0..3 = x, rows 4..7 = x - pi/2 (batch on lanes)
    hfull_ref,   # (1, BT)
    w0_ref,      # (H, 2*N_IN)   folded inlayer ∘ encoder[0]   (torch (out,in) layout)
    b0_ref,      # (H, 1)
    w_hid_ref,   # (N_HID_F, H, H)  remaining tanh layers (enc[1:], dec0∘K, dec[1:])
    b_hid_ref,   # (N_HID_F, H, 1)
    w_out_ref,   # (N_OUT, H)
    b_out_ref,   # (N_OUT, 1)
    out_ref,     # (1, BT)
):
    # hi/lo bf16 weight splits hoisted out of the sub-tile loop (tiny VPU work).
    w0_hi, w0_lo = _split_bf16(w0_ref[...])
    wh = [_split_bf16(w_hid_ref[i]) for i in range(N_HID_F)]
    wo_hi, wo_lo = _split_bf16(w_out_ref[...])
    b0 = b0_ref[...]
    bh = [b_hid_ref[i] for i in range(N_HID_F)]
    b_out = b_out_ref[...]

    n_sub = x_ref.shape[-1] // SUB            # static Python int
    for s in range(n_sub):                    # static unroll; each iter stores its slab
        c0 = s * SUB
        # Full-vreg lift: cos of rows 0..3 = cos(x), cos of rows 4..7 = sin(x).
        cx = jnp.cos(x_ref[:, c0:c0 + SUB])                          # (2*N_IN, SUB)
        hid = jnp.tanh(_dot3(w0_hi, w0_lo, cx) + b0)                 # inlayer ∘ enc[0]
        for i in range(N_HID_F):
            hid = jnp.tanh(_dot3(wh[i][0], wh[i][1], hid) + bh[i])
        out = _dot3(wo_hi, wo_lo, hid) + b_out                       # (N_OUT, SUB)
        # clip(h_tem, 0, hFull); padded lanes have hFull == 0 -> output 0.
        out_ref[:, c0:c0 + SUB] = jnp.clip(out, 0.0, hfull_ref[:, c0:c0 + SUB])


# ----------------------------- wrapper ---------------------------------------
def _full_spec(shape):
    nd = len(shape)
    return pl.BlockSpec(shape, lambda i, _z=(0,) * nd: _z)


def _pick_bt(n):
    """Lanes per grid step: a multiple of SUB, grown (up to MAX_SUB_PER_STEP*SUB)
    only while the parallel grid keeps >= 4 programs (2 TensorCores on v7x)."""
    subs = max(1, pl.cdiv(n, SUB))
    per_step = 1
    while per_step < MAX_SUB_PER_STEP and subs >= 8 * per_step:
        per_step *= 2
    return per_step * SUB


@jax.jit
def meta_surrogate_h_forward(h, z, delt_q, dt, hfull, fparams):
    # torch: x = cat([h, delt_q, z, dt], axis=1).  Here feature-major plus a
    # phase-shifted copy so one in-kernel cos() produces [cos(x); sin(x)].
    cols = [h, delt_q, z, dt]
    x4 = jnp.stack([c.reshape(-1).astype(jnp.float32) for c in cols], axis=0)   # (4, n)
    x8 = jnp.concatenate([x4, x4 - jnp.float32(np.pi / 2)], axis=0)             # (8, n)
    hf = hfull.reshape(1, -1).astype(jnp.float32)                               # (1, n)
    n = x8.shape[1]

    bt = _pick_bt(n)
    n_pad = pl.cdiv(n, bt) * bt
    pad = n_pad - n
    if pad:
        x8 = jnp.pad(x8, ((0, 0), (0, pad)))
        hf = jnp.pad(hf, ((0, 0), (0, pad)))   # padded lanes clip to [0, 0] -> 0

    flat = [fparams[k] for k in FOLDED_KEYS]

    # Advisory cost estimate: transcendental-heavy, tiny flops/bytes.
    # Param bytes counted ONCE (constant index maps: no per-step weight re-fetch).
    flops_per_row = 2 * (2 * N_IN * H + N_HID_F * H * H + H * N_OUT)
    trans_per_row = 2 * N_IN + (N_HID_F + 1) * H
    param_bytes = int(sum(int(p.size) for p in flat)) * 4
    cost = pl.CostEstimate(
        flops=flops_per_row * n_pad,
        transcendentals=trans_per_row * n_pad,
        bytes_accessed=4 * (2 * N_IN + 2) * n_pad + param_bytes,
    )

    out = pl.pallas_call(
        meta_surrogate_h_kernel,
        out_shape=jax.ShapeDtypeStruct((1, n_pad), jnp.float32),
        grid=(n_pad // bt,),
        in_specs=[pl.BlockSpec((2 * N_IN, bt), lambda i: (0, i)),
                  pl.BlockSpec((1, bt), lambda i: (0, i))] +
                 [_full_spec(p.shape) for p in flat],
        out_specs=pl.BlockSpec((1, bt), lambda i: (0, i)),
        compiler_params=pltpu.CompilerParams(dimension_semantics=("parallel",)),
        cost_estimate=cost,
    )(x8, hf, *flat)

    return out[:, :n].reshape(-1, 1)   # torch forward returns shape (N, 1)


# ----------------------------- offline param folding (float64) ---------------
def fold_params(params):
    """Fold inlayer -> encoder[0] and K -> decoder[0] (no nonlinearity between
    them in the torch module).  Done in float64 on host, cast back to f32."""
    f64 = lambda a: np.asarray(a, dtype=np.float64)
    w_in, b_in = f64(params["w_in"]), f64(params["b_in"])
    w_hid, b_hid = f64(params["w_hid"]), f64(params["b_hid"])
    w_out, b_out = f64(params["w_out"]), f64(params["b_out"])

    w0 = w_hid[0] @ w_in                               # (H, 2*N_IN)
    b0 = w_hid[0] @ b_in + b_hid[0]                    # (H, 1)
    w_dk = w_hid[L + 1] @ w_hid[L]                     # decoder[0] ∘ K
    b_dk = w_hid[L + 1] @ b_hid[L] + b_hid[L + 1]

    ws = [w_hid[i] for i in range(1, L)] + [w_dk] + \
         [w_hid[i] for i in range(L + 2, 2 * L + 1)]
    bs = [b_hid[i] for i in range(1, L)] + [b_dk] + \
         [b_hid[i] for i in range(L + 2, 2 * L + 1)]

    f32 = lambda a: jnp.asarray(np.asarray(a, dtype=np.float32))
    return dict(w0=f32(w0), b0=f32(b0),
                w_hid=f32(np.stack(ws)), b_hid=f32(np.stack(bs)),
                w_out=f32(w_out), b_out=f32(b_out))


# ----------------------------- deterministic param init ----------------------
def _init_linear(key, fan_in, fan_out):
    """torch.nn.Linear default init: U(-1/sqrt(fan_in), 1/sqrt(fan_in));
    weight kept in torch's (out_features, in_features) layout."""
    kw, kb = jax.random.split(key)
    bound = 1.0 / float(np.sqrt(fan_in))
    w = jax.random.uniform(kw, (fan_out, fan_in), jnp.float32, -bound, bound)
    b = jax.random.uniform(kb, (fan_out, 1), jnp.float32, -bound, bound)
    return w, b


def init_nn_params(key, n_input, n_output, n_h, num_layer):
    n_lin = 1 + (2 * num_layer + 1) + 1
    keys = jax.random.split(key, n_lin)
    w_in, b_in = _init_linear(keys[0], 2 * n_input, n_h)
    w_hid, b_hid = [], []
    for i in range(2 * num_layer + 1):
        w, b = _init_linear(keys[1 + i], n_h, n_h)
        w_hid.append(w)
        b_hid.append(b)
    w_out, b_out = _init_linear(keys[-1], n_h, n_output)
    return dict(w_in=w_in, b_in=b_in,
                w_hid=jnp.stack(w_hid), b_hid=jnp.stack(b_hid),
                w_out=w_out, b_out=b_out)


# ----------------------------- pure-JAX reference (unfolded torch semantics) --
def _nn_ref(x, p, num_layer):
    x = jnp.concatenate([jnp.cos(x), jnp.sin(x)], axis=1)        # (N, 2*n_in)
    mm = lambda a, w: jnp.dot(a, w.T, precision=_HIGHEST)
    hh = mm(x, p["w_in"]) + p["b_in"][:, 0]
    for i in range(num_layer):
        hh = jnp.tanh(mm(hh, p["w_hid"][i]) + p["b_hid"][i][:, 0])
    hh = mm(hh, p["w_hid"][num_layer]) + p["b_hid"][num_layer][:, 0]
    for i in range(num_layer):
        k = num_layer + 1 + i
        hh = jnp.tanh(mm(hh, p["w_hid"][k]) + p["b_hid"][k][:, 0])
    return mm(hh, p["w_out"]) + p["b_out"][:, 0]


def meta_surrogate_h_ref(h, z, delt_q, dt, hfull, params):
    r = lambda v: v.reshape(-1, 1).astype(jnp.float32)
    x = jnp.concatenate([r(h), r(delt_q), r(z), r(dt)], axis=1)  # torch cat order
    h_tem = _nn_ref(x, params, L)
    return jnp.clip(h_tem, 0.0, r(hfull))


# ----------------------------- main ------------------------------------------
if __name__ == "__main__":
    params = init_nn_params(jax.random.PRNGKey(0), N_IN, N_OUT, H, L)  # hlayer=[4,1,32,2]
    fparams = fold_params(params)

    def make_inputs(key, n):
        kd = jax.random.split(key, 5)
        h      = jax.random.uniform(kd[0], (n,), jnp.float32, 1.0, 3.0)
        z      = jax.random.uniform(kd[1], (n,), jnp.float32, 0.0, 1.0)
        delt_q = jax.random.uniform(kd[2], (n,), jnp.float32, -0.5, 0.5)
        dt     = jnp.full((n,), 5.0, jnp.float32)
        hfull  = jax.random.uniform(kd[4], (n,), jnp.float32, 1.0, 2.0)
        return h, z, delt_q, dt, hfull

    # n=8: small single-program case.  n=3000: exercises the multi-program grid
    # and the multi-sub-tile (2 x 256 lanes per step) in-kernel loop.
    for n in (8, 3000):
        h, z, delt_q, dt, hfull = make_inputs(jax.random.PRNGKey(0), n)
        out = meta_surrogate_h_forward(h, z, delt_q, dt, hfull, fparams)
        jax.block_until_ready(out)
        ref = meta_surrogate_h_ref(h, z, delt_q, dt, hfull, params)
        np.testing.assert_allclose(np.asarray(out), np.asarray(ref),
                                   rtol=1e-4, atol=1e-4)
        assert out.shape == (n, 1) and out.dtype == jnp.float32

    print("KERNEL_OK")
</pallas_src>

<mosaic_0001>
module attributes {stable_mosaic.version = 11 : i64} {
  func.func @meta_surrogate_h_kernel(%arg0: i32, %arg1: memref<8x256xf32, #tpu.memory_space<vmem>>, %arg2: memref<1x256xf32, #tpu.memory_space<vmem>>, %arg3: memref<32x8xf32, #tpu.memory_space<vmem>>, %arg4: memref<32x1xf32, #tpu.memory_space<vmem>>, %arg5: memref<3x32x32xf32, #tpu.memory_space<vmem>>, %arg6: memref<3x32x1xf32, #tpu.memory_space<vmem>>, %arg7: memref<1x32xf32, #tpu.memory_space<vmem>>, %arg8: memref<1x1xf32, #tpu.memory_space<vmem>>, %arg9: memref<1x256xf32, #tpu.memory_space<vmem>>) attributes {dimension_semantics = [#tpu.dimension_semantics<parallel>], iteration_bounds = array<i64: 1>, scalar_prefetch = 0 : i64, scratch_operands = 0 : i64, tpu.core_type = #tpu.core_type<tc>, window_params = [{transform_indices = @transform_0, window_bounds = array<i64: 8, 256>}, {transform_indices = @transform_1, window_bounds = array<i64: 1, 256>}, {pipeline_mode = #tpu.pipeline_mode<synchronous>, transform_indices = @transform_2, window_bounds = array<i64: 32, 8>}, {pipeline_mode = #tpu.pipeline_mode<synchronous>, transform_indices = @transform_3, window_bounds = array<i64: 32, 1>}, {pipeline_mode = #tpu.pipeline_mode<synchronous>, transform_indices = @transform_4, window_bounds = array<i64: 3, 32, 32>}, {pipeline_mode = #tpu.pipeline_mode<synchronous>, transform_indices = @transform_5, window_bounds = array<i64: 3, 32, 1>}, {pipeline_mode = #tpu.pipeline_mode<synchronous>, transform_indices = @transform_6, window_bounds = array<i64: 1, 32>}, {pipeline_mode = #tpu.pipeline_mode<synchronous>, transform_indices = @transform_7, window_bounds = array<i64: 1, 1>}, {transform_indices = @transform_8, window_bounds = array<i64: 1, 256>}]} {
    %c0 = arith.constant 0 : index
    %c0_0 = arith.constant 0 : index
    %0 = vector.load %arg3[%c0, %c0_0] : memref<32x8xf32, #tpu.memory_space<vmem>>, vector<32x8xf32>
    %1 = arith.truncf %0 : vector<32x8xf32> to vector<32x8xbf16>
    %2 = arith.extf %1 : vector<32x8xbf16> to vector<32x8xf32>
    %3 = arith.subf %0, %2 : vector<32x8xf32>
    %4 = arith.truncf %3 : vector<32x8xf32> to vector<32x8xbf16>
    %c0_1 = arith.constant 0 : index
    %c0_2 = arith.constant 0 : index
    %c0_3 = arith.constant 0 : index
    %5 = vector.load %arg5[%c0_1, %c0_2, %c0_3] : memref<3x32x32xf32, #tpu.memory_space<vmem>>, vector<1x32x32xf32>
    %6 = vector.shape_cast %5 : vector<1x32x32xf32> to vector<32x32xf32>
    %7 = arith.truncf %6 : vector<32x32xf32> to vector<32x32xbf16>
    %8 = arith.extf %7 : vector<32x32xbf16> to vector<32x32xf32>
    %9 = arith.subf %6, %8 : vector<32x32xf32>
    %10 = arith.truncf %9 : vector<32x32xf32> to vector<32x32xbf16>
    %c1 = arith.constant 1 : index
    %c0_4 = arith.constant 0 : index
    %c0_5 = arith.constant 0 : index
    %11 = vector.load %arg5[%c1, %c0_4, %c0_5] : memref<3x32x32xf32, #tpu.memory_space<vmem>>, vector<1x32x32xf32>
    %12 = vector.shape_cast %11 : vector<1x32x32xf32> to vector<32x32xf32>
    %13 = arith.truncf %12 : vector<32x32xf32> to vector<32x32xbf16>
    %14 = arith.extf %13 : vector<32x32xbf16> to vector<32x32xf32>
    %15 = arith.subf %12, %14 : vector<32x32xf32>
    %16 = arith.truncf %15 : vector<32x32xf32> to vector<32x32xbf16>
    %c2 = arith.constant 2 : index
    %c0_6 = arith.constant 0 : index
    %c0_7 = arith.constant 0 : index
    %17 = vector.load %arg5[%c2, %c0_6, %c0_7] : memref<3x32x32xf32, #tpu.memory_space<vmem>>, vector<1x32x32xf32>
    %18 = vector.shape_cast %17 : vector<1x32x32xf32> to vector<32x32xf32>
    %19 = arith.truncf %18 : vector<32x32xf32> to vector<32x32xbf16>
    %20 = arith.extf %19 : vector<32x32xbf16> to vector<32x32xf32>
    %21 = arith.subf %18, %20 : vector<32x32xf32>
    %22 = arith.truncf %21 : vector<32x32xf32> to vector<32x32xbf16>
    %c0_8 = arith.constant 0 : index
    %c0_9 = arith.constant 0 : index
    %23 = vector.load %arg7[%c0_8, %c0_9] : memref<1x32xf32, #tpu.memory_space<vmem>>, vector<1x32xf32>
    %24 = arith.truncf %23 : vector<1x32xf32> to vector<1x32xbf16>
    %25 = arith.extf %24 : vector<1x32xbf16> to vector<1x32xf32>
    %26 = arith.subf %23, %25 : vector<1x32xf32>
    %27 = arith.truncf %26 : vector<1x32xf32> to vector<1x32xbf16>
    %c0_10 = arith.constant 0 : index
    %c0_11 = arith.constant 0 : index
    %28 = vector.load %arg4[%c0_10, %c0_11] : memref<32x1xf32, #tpu.memory_space<vmem>>, vector<32x1xf32>
    %c0_12 = arith.constant 0 : index
    %c0_13 = arith.constant 0 : index
    %c0_14 = arith.constant 0 : index
    %29 = vector.load %arg6[%c0_12, %c0_13, %c0_14] : memref<3x32x1xf32, #tpu.memory_space<vmem>>, vector<1x32x1xf32>
    %30 = vector.shape_cast %29 : vector<1x32x1xf32> to vector<32x1xf32>
    %c1_15 = arith.constant 1 : index
    %c0_16 = arith.constant 0 : index
    %c0_17 = arith.constant 0 : index
    %31 = vector.load %arg6[%c1_15, %c0_16, %c0_17] : memref<3x32x1xf32, #tpu.memory_space<vmem>>, vector<1x32x1xf32>
    %32 = vector.shape_cast %31 : vector<1x32x1xf32> to vector<32x1xf32>
    %c2_18 = arith.constant 2 : index
    %c0_19 = arith.constant 0 : index
    %c0_20 = arith.constant 0 : index
    %33 = vector.load %arg6[%c2_18, %c0_19, %c0_20] : memref<3x32x1xf32, #tpu.memory_space<vmem>>, vector<1x32x1xf32>
    %34 = vector.shape_cast %33 : vector<1x32x1xf32> to vector<32x1xf32>
    %c0_21 = arith.constant 0 : index
    %c0_22 = arith.constant 0 : index
    %35 = vector.load %arg8[%c0_21, %c0_22] : memref<1x1xf32, #tpu.memory_space<vmem>>, vector<1x1xf32>
    %c0_23 = arith.constant 0 : index
    %c0_24 = arith.constant 0 : index
    %36 = vector.load %arg1[%c0_23, %c0_24] : memref<8x256xf32, #tpu.memory_space<vmem>>, vector<8x256xf32>
    %37 = math.cos %36 : vector<8x256xf32>
    %38 = arith.truncf %37 : vector<8x256xf32> to vector<8x256xbf16>
    %39 = arith.extf %38 : vector<8x256xbf16> to vector<8x256xf32>
    %40 = arith.subf %37, %39 : vector<8x256xf32>
    %41 = arith.truncf %40 : vector<8x256xf32> to vector<8x256xbf16>
    %cst = arith.constant dense<0.000000e+00> : vector<32x256xf32>
    %42 = tpu.matmul %1, %38, %cst {dimension_numbers = #tpu.dot_dimension_numbers<[1], [0], [0], [1], [0, 0, 1, 1], [], []>} : vector<32x8xbf16>, vector<8x256xbf16>, vector<32x256xf32> -> vector<32x256xf32>
    %cst_25 = arith.constant dense<0.000000e+00> : vector<32x256xf32>
    %43 = tpu.matmul %1, %41, %cst_25 {dimension_numbers = #tpu.dot_dimension_numbers<[1], [0], [0], [1], [0, 0, 1, 1], [], []>} : vector<32x8xbf16>, vector<8x256xbf16>, vector<32x256xf32> -> vector<32x256xf32>
    %44 = arith.addf %42, %43 : vector<32x256xf32>
    %cst_26 = arith.constant dense<0.000000e+00> : vector<32x256xf32>
    %45 = tpu.matmul %4, %38, %cst_26 {dimension_numbers = #tpu.dot_dimension_numbers<[1], [0], [0], [1], [0, 0, 1, 1], [], []>} : vector<32x8xbf16>, vector<8x256xbf16>, vector<32x256xf32> -> vector<32x256xf32>
    %46 = arith.addf %44, %45 : vector<32x256xf32>
    %47 = vector.broadcast %28 : vector<32x1xf32> to vector<32x256xf32>
    %48 = arith.addf %46, %47 : vector<32x256xf32>
    %49 = math.tanh %48 : vector<32x256xf32>
    %50 = arith.truncf %49 : vector<32x256xf32> to vector<32x256xbf16>
    %51 = arith.extf %50 : vector<32x256xbf16> to vector<32x256xf32>
    %52 = arith.subf %49, %51 : vector<32x256xf32>
    %53 = arith.truncf %52 : vector<32x256xf32> to vector<32x256xbf16>
    %cst_27 = arith.constant dense<0.000000e+00> : vector<32x256xf32>
    %54 = tpu.matmul %7, %50, %cst_27 {dimension_numbers = #tpu.dot_dimension_numbers<[1], [0], [0], [1], [0, 0, 1, 1], [], []>} : vector<32x32xbf16>, vector<32x256xbf16>, vector<32x256xf32> -> vector<32x256xf32>
    %cst_28 = arith.constant dense<0.000000e+00> : vector<32x256xf32>
    %55 = tpu.matmul %7, %53, %cst_28 {dimension_numbers = #tpu.dot_dimension_numbers<[1], [0], [0], [1], [0, 0, 1, 1], [], []>} : vector<32x32xbf16>, vector<32x256xbf16>, vector<32x256xf32> -> vector<32x256xf32>
    %56 = arith.addf %54, %55 : vector<32x256xf32>
    %cst_29 = arith.constant dense<0.000000e+00> : vector<32x256xf32>
    %57 = tpu.matmul %10, %50, %cst_29 {dimension_numbers = #tpu.dot_dimension_numbers<[1], [0], [0], [1], [0, 0, 1, 1], [], []>} : vector<32x32xbf16>, vector<32x256xbf16>, vector<32x256xf32> -> vector<32x256xf32>
    %58 = arith.addf %56, %57 : vector<32x256xf32>
    %59 = vector.broadcast %30 : vector<32x1xf32> to vector<32x256xf32>
    %60 = arith.addf %58, %59 : vector<32x256xf32>
    %61 = math.tanh %60 : vector<32x256xf32>
    %62 = arith.truncf %61 : vector<32x256xf32> to vector<32x256xbf16>
    %63 = arith.extf %62 : vector<32x256xbf16> to vector<32x256xf32>
    %64 = arith.subf %61, %63 : vector<32x256xf32>
    %65 = arith.truncf %64 : vector<32x256xf32> to vector<32x256xbf16>
    %cst_30 = arith.constant dense<0.000000e+00> : vector<32x256xf32>
    %66 = tpu.matmul %13, %62, %cst_30 {dimension_numbers = #tpu.dot_dimension_numbers<[1], [0], [0], [1], [0, 0, 1, 1], [], []>} : vector<32x32xbf16>, vector<32x256xbf16>, vector<32x256xf32> -> vector<32x256xf32>
    %cst_31 = arith.constant dense<0.000000e+00> : vector<32x256xf32>
    %67 = tpu.matmul %13, %65, %cst_31 {dimension_numbers = #tpu.dot_dimension_numbers<[1], [0], [0], [1], [0, 0, 1, 1], [], []>} : vector<32x32xbf16>, vector<32x256xbf16>, vector<32x256xf32> -> vector<32x256xf32>
    %68 = arith.addf %66, %67 : vector<32x256xf32>
    %cst_32 = arith.constant dense<0.000000e+00> : vector<32x256xf32>
    %69 = tpu.matmul %16, %62, %cst_32 {dimension_numbers = #tpu.dot_dimension_numbers<[1], [0], [0], [1], [0, 0, 1, 1], [], []>} : vector<32x32xbf16>, vector<32x256xbf16>, vector<32x256xf32> -> vector<32x256xf32>
    %70 = arith.addf %68, %69 : vector<32x256xf32>
    %71 = vector.broadcast %32 : vector<32x1xf32> to vector<32x256xf32>
    %72 = arith.addf %70, %71 : vector<32x256xf32>
    %73 = math.tanh %72 : vector<32x256xf32>
    %74 = arith.truncf %73 : vector<32x256xf32> to vector<32x256xbf16>
    %75 = arith.extf %74 : vector<32x256xbf16> to vector<32x256xf32>
    %76 = arith.subf %73, %75 : vector<32x256xf32>
    %77 = arith.truncf %76 : vector<32x256xf32> to vector<32x256xbf16>
    %cst_33 = arith.constant dense<0.000000e+00> : vector<32x256xf32>
    %78 = tpu.matmul %19, %74, %cst_33 {dimension_numbers = #tpu.dot_dimension_numbers<[1], [0], [0], [1], [0, 0, 1, 1], [], []>} : vector<32x32xbf16>, vector<32x256xbf16>, vector<32x256xf32> -> vector<32x256xf32>
    %cst_34 = arith.constant dense<0.000000e+00> : vector<32x256xf32>
    %79 = tpu.matmul %19, %77, %cst_34 {dimension_numbers = #tpu.dot_dimension_numbers<[1], [0], [0], [1], [0, 0, 1, 1], [], []>} : vector<32x32xbf16>, vector<32x256xbf16>, vector<32x256xf32> -> vector<32x256xf32>
    %80 = arith.addf %78, %79 : vector<32x256xf32>
    %cst_35 = arith.constant dense<0.000000e+00> : vector<32x256xf32>
    %81 = tpu.matmul %22, %74, %cst_35 {dimension_numbers = #tpu.dot_dimension_numbers<[1], [0], [0], [1], [0, 0, 1, 1], [], []>} : vector<32x32xbf16>, vector<32x256xbf16>, vector<32x256xf32> -> vector<32x256xf32>
    %82 = arith.addf %80, %81 : vector<32x256xf32>
    %83 = vector.broadcast %34 : vector<32x1xf32> to vector<32x256xf32>
    %84 = arith.addf %82, %83 : vector<32x256xf32>
    %85 = math.tanh %84 : vector<32x256xf32>
    %86 = arith.truncf %85 : vector<32x256xf32> to vector<32x256xbf16>
    %87 = arith.extf %86 : vector<32x256xbf16> to vector<32x256xf32>
    %88 = arith.subf %85, %87 : vector<32x256xf32>
    %89 = arith.truncf %88 : vector<32x256xf32> to vector<32x256xbf16>
    %cst_36 = arith.constant dense<0.000000e+00> : vector<1x256xf32>
    %90 = tpu.matmul %24, %86, %cst_36 {dimension_numbers = #tpu.dot_dimension_numbers<[1], [0], [0], [1], [0, 0, 1, 1], [], []>} : vector<1x32xbf16>, vector<32x256xbf16>, vector<1x256xf32> -> vector<1x256xf32>
    %cst_37 = arith.constant dense<0.000000e+00> : vector<1x256xf32>
    %91 = tpu.matmul %24, %89, %cst_37 {dimension_numbers = #tpu.dot_dimension_numbers<[1], [0], [0], [1], [0, 0, 1, 1], [], []>} : vector<1x32xbf16>, vector<32x256xbf16>, vector<1x256xf32> -> vector<1x256xf32>
    %92 = arith.addf %90, %91 : vector<1x256xf32>
    %cst_38 = arith.constant dense<0.000000e+00> : vector<1x256xf32>
    %93 = tpu.matmul %27, %86, %cst_38 {dimension_numbers = #tpu.dot_dimension_numbers<[1], [0], [0], [1], [0, 0, 1, 1], [], []>} : vector<1x32xbf16>, vector<32x256xbf16>, vector<1x256xf32> -> vector<1x256xf32>
    %94 = arith.addf %92, %93 : vector<1x256xf32>
    %95 = vector.broadcast %35 : vector<1x1xf32> to vector<1x256xf32>
    %96 = arith.addf %94, %95 : vector<1x256xf32>
    %c0_39 = arith.constant 0 : index
    %c0_40 = arith.constant 0 : index
    %97 = vector.load %arg2[%c0_39, %c0_40] : memref<1x256xf32, #tpu.memory_space<vmem>>, vector<1x256xf32>
    %cst_41 = arith.constant 0.000000e+00 : f32
    %98 = vector.broadcast %cst_41 : f32 to vector<1x256xf32>
    %99 = arith.maximumf %98, %96 : vector<1x256xf32>
    %100 = arith.minimumf %97, %99 : vector<1x256xf32>
    %c0_42 = arith.constant 0 : index
    %c0_43 = arith.constant 0 : index
    %101 = vector.load %arg9[%c0_42, %c0_43] : memref<1x256xf32, #tpu.memory_space<vmem>>, vector<1x256xf32>
    tpu.vector_store %arg9[%c0_42, %c0_43], %100 {strides = array<i32>} : memref<1x256xf32, #tpu.memory_space<vmem>>, vector<1x256xf32>,
    return
  }
  func.func @transform_0(%arg0: i32) -> (i32, i32) {
    %c0_i32 = arith.constant 0 : i32
    %c0_i32_0 = arith.constant 0 : i32
    return %c0_i32, %arg0 : i32, i32
  }
  func.func @transform_1(%arg0: i32) -> (i32, i32) {
    %c0_i32 = arith.constant 0 : i32
    %c0_i32_0 = arith.constant 0 : i32
    return %c0_i32, %arg0 : i32, i32
  }
  func.func @transform_2(%arg0: i32) -> (i32, i32) {
    %c0_i32 = arith.constant 0 : i32
    %c0_i32_0 = arith.constant 0 : i32
    %c0_i32_1 = arith.constant 0 : i32
    return %c0_i32, %c0_i32_0 : i32, i32
  }
  func.func @transform_3(%arg0: i32) -> (i32, i32) {
    %c0_i32 = arith.constant 0 : i32
    %c0_i32_0 = arith.constant 0 : i32
    %c0_i32_1 = arith.constant 0 : i32
    return %c0_i32, %c0_i32_0 : i32, i32
  }
  func.func @transform_4(%arg0: i32) -> (i32, i32, i32) {
    %c0_i32 = arith.constant 0 : i32
    %c0_i32_0 = arith.constant 0 : i32
    %c0_i32_1 = arith.constant 0 : i32
    %c0_i32_2 = arith.constant 0 : i32
    return %c0_i32, %c0_i32_0, %c0_i32_1 : i32, i32, i32
  }
  func.func @transform_5(%arg0: i32) -> (i32, i32, i32) {
    %c0_i32 = arith.constant 0 : i32
    %c0_i32_0 = arith.constant 0 : i32
    %c0_i32_1 = arith.constant 0 : i32
    %c0_i32_2 = arith.constant 0 : i32
    return %c0_i32, %c0_i32_0, %c0_i32_1 : i32, i32, i32
  }
  func.func @transform_6(%arg0: i32) -> (i32, i32) {
    %c0_i32 = arith.constant 0 : i32
    %c0_i32_0 = arith.constant 0 : i32
    %c0_i32_1 = arith.constant 0 : i32
    return %c0_i32, %c0_i32_0 : i32, i32
  }
  func.func @transform_7(%arg0: i32) -> (i32, i32) {
    %c0_i32 = arith.constant 0 : i32
    %c0_i32_0 = arith.constant 0 : i32
    %c0_i32_1 = arith.constant 0 : i32
    return %c0_i32, %c0_i32_0 : i32, i32
  }
  func.func @transform_8(%arg0: i32) -> (i32, i32) {
    %c0_i32 = arith.constant 0 : i32
    %c0_i32_0 = arith.constant 0 : i32
    return %c0_i32, %arg0 : i32, i32
  }
}

</mosaic_0001>

<llo_original>
// kernel: meta_surrogate_h_forward.1
$region0: #{meta_surrogate_h_forward.1}
  #allocation0 [shape = 'u32[]', space=smem, size = 0x4, offset = 0x4, fixed_abs, tag = 'smem constant byte address 0x4 - core index']
  #allocation1 [shape = 'u32[72,128]{1,0:T(1,128)}', space=vmem, size = 0x9000, scoped, tag = 'internal scratch']
  #allocation2 [shape = 'f32[1,1]{1,0:T(1,128)S(1)}', space=vmem, size = 0x200, scoped, tag = 'scoped memory for meta_surrogate_h_forward.1']
  %s0 = inlined_call_operand.vmem [shape: f32[8,256], index: 0, kind: input, shape index: {}]
  %s1 = inlined_call_operand.vmem [shape: f32[1,256], index: 1, kind: input, shape index: {}]
  %s2 = inlined_call_operand.vmem [shape: f32[32,8], index: 2, kind: input, shape index: {}]
  %s3 = inlined_call_operand.vmem [shape: f32[32,1], index: 3, kind: input, shape index: {}]
  %s4 = inlined_call_operand.vmem [shape: f32[3,32,32], index: 4, kind: input, shape index: {}]
  %s5 = inlined_call_operand.vmem [shape: f32[3,32,1], index: 5, kind: input, shape index: {}]
  %s6 = inlined_call_operand.vmem [shape: f32[1,32], index: 6, kind: input, shape index: {}]
  %s7 = inlined_call_operand.<no memory space> [shape: f32[1,1], index: 7, kind: input, shape index: {}]
  %s8 = inlined_call_operand.vmem [shape: f32[1,256], index: 8, kind: output, shape index: {}]
  %s9 = sld [smem:[#allocation0]]
  $region42: #{meta_surrogate_h_forward.1} parent=0
    _
  %s11 = ssub.s32 1, %s9
  %s12 = scalar_select 0, %s11, %s9
  %v13 = vstv %s7
  %14 = vst [vmem:[#allocation2] sm:$0x1] %v13
  // Predicated region
  $region2: #{meta_surrogate_h_forward.1} parent=0 // pred_check
    _
  $region3: #{meta_surrogate_h_forward.1} parent=0 // pred_check_branch
    %16 = sbr.rel (0) target = $region5
  $region4: #{meta_surrogate_h_forward.1} parent=0 // pred_region
    _
  $region5: #{meta_surrogate_h_forward.1} parent=0 // pred_fallthru
    _
  // Predicated region
  $region6: #{meta_surrogate_h_forward.1} parent=0 // pred_check
    _
  $region7: #{meta_surrogate_h_forward.1} parent=0 // pred_check_branch
    %18 = sbr.rel (0) target = $region9
  $region8: #{meta_surrogate_h_forward.1} parent=0 // pred_region
    _
  $region9: #{meta_surrogate_h_forward.1} parent=0 // pred_fallthru
    _
  // Predicated region
  $region10: #{meta_surrogate_h_forward.1} parent=0 // pred_check
    _
  $region11: #{meta_surrogate_h_forward.1} parent=0 // pred_check_branch
    %20 = sbr.rel (0) target = $region13
  $region12: #{meta_surrogate_h_forward.1} parent=0 // pred_region
    _
  $region13: #{meta_surrogate_h_forward.1} parent=0 // pred_fallthru
    _
  // Predicated region
  $region14: #{meta_surrogate_h_forward.1} parent=0 // pred_check
    _
  $region15: #{meta_surrogate_h_forward.1} parent=0 // pred_check_branch
    %22 = sbr.rel (0) target = $region17
  $region16: #{meta_surrogate_h_forward.1} parent=0 // pred_region
    _
  $region17: #{meta_surrogate_h_forward.1} parent=0 // pred_fallthru
    _
  // Predicated region
  $region18: #{meta_surrogate_h_forward.1} parent=0 // pred_check
    _
  $region19: #{meta_surrogate_h_forward.1} parent=0 // pred_check_branch
    %24 = sbr.rel (0) target = $region21
  $region20: #{meta_surrogate_h_forward.1} parent=0 // pred_region
    _
  $region21: #{meta_surrogate_h_forward.1} parent=0 // pred_fallthru
    _
  // Predicated region
  $region22: #{meta_surrogate_h_forward.1} parent=0 // pred_check
    _
  $region23: #{meta_surrogate_h_forward.1} parent=0 // pred_check_branch
    %26 = sbr.rel (0) target = $region25
  $region24: #{meta_surrogate_h_forward.1} parent=0 // pred_region
    _
  $region25: #{meta_surrogate_h_forward.1} parent=0 // pred_fallthru
    _
  // Predicated region
  $region26: #{meta_surrogate_h_forward.1} parent=0 // pred_check
    _
  $region27: #{meta_surrogate_h_forward.1} parent=0 // pred_check_branch
    %28 = sbr.rel (0) target = $region29
  $region28: #{meta_surrogate_h_forward.1} parent=0 // pred_region
    _
  $region29: #{meta_surrogate_h_forward.1} parent=0 // pred_fallthru
    _
  // Predicated region
  $region30: #{meta_surrogate_h_forward.1} parent=0 // pred_check
    _
  $region31: #{meta_surrogate_h_forward.1} parent=0 // pred_check_branch
    %30 = sbr.rel (0) target = $region33
  $region32: #{meta_surrogate_h_forward.1} parent=0 // pred_region
    _
  $region33: #{meta_surrogate_h_forward.1} parent=0 // pred_fallthru
    _
  %v32 = vld [vmem:[%s2] sm:$0xff]
  %v33 = vld [vmem:[%s2 + $0x8] sm:$0xff]
  %v34 = vld [vmem:[%s2 + $0x10] sm:$0xff]
  %v35 = vld [vmem:[%s2 + $0x18] sm:$0xff]
  %v36 = vpack.c.bf16 %v32, %v32
  %v37 = vpack.c.bf16 %v33, %v33
  %v38 = vpack.c.bf16 %v34, %v34
  %v39 = vpack.c.bf16 %v35, %v35
  %v40 = vunpack.c.l.bf16 %v36
  %v41 = vunpack.c.l.bf16 %v37
  %v42 = vunpack.c.l.bf16 %v38
  %v43 = vunpack.c.l.bf16 %v39
  %v44 = vsub.f32 %v32, %v40
  %v45 = vsub.f32 %v33, %v41
  %v46 = vsub.f32 %v34, %v42
  %v47 = vsub.f32 %v35, %v43
  %v48 = vpack.c.bf16 %v45, %v44
  %v49 = vpack.c.bf16 %v47, %v46
  %v50 = vld [vmem:[%s4] sm:$0xff]
  %v51 = vld [vmem:[%s4 + $0x8] sm:$0xff]
  %v52 = vld [vmem:[%s4 + $0x10] sm:$0xff]
  %v53 = vld [vmem:[%s4 + $0x18] sm:$0xff]
  %v54 = vpack.c.bf16 %v50, %v50
  %v55 = vpack.c.bf16 %v51, %v51
  %v56 = vpack.c.bf16 %v52, %v52
  %v57 = vpack.c.bf16 %v53, %v53
  %v58 = vunpack.c.l.bf16 %v54
  %v59 = vunpack.c.l.bf16 %v55
  %v60 = vunpack.c.l.bf16 %v56
  %v61 = vunpack.c.l.bf16 %v57
  %v62 = vsub.f32 %v50, %v58
  %v63 = vsub.f32 %v51, %v59
  %v64 = vsub.f32 %v52, %v60
  %v65 = vsub.f32 %v53, %v61
  %v66 = vpack.c.bf16 %v63, %v62
  %v67 = vpack.c.bf16 %v65, %v64
  %s68 = scalar_lea.vmem %s4, 32
  %v69 = vld [vmem:[%s68] sm:$0xff]
  %v70 = vld [vmem:[%s68 + $0x8] sm:$0xff]
  %v71 = vld [vmem:[%s68 + $0x10] sm:$0xff]
  %v72 = vld [vmem:[%s68 + $0x18] sm:$0xff]
  %v73 = vpack.c.bf16 %v69, %v69
  %v74 = vpack.c.bf16 %v70, %v70
  %v75 = vpack.c.bf16 %v71, %v71
  %v76 = vpack.c.bf16 %v72, %v72
  %v77 = vunpack.c.l.bf16 %v73
  %v78 = vunpack.c.l.bf16 %v74
  %v79 = vunpack.c.l.bf16 %v75
  %v80 = vunpack.c.l.bf16 %v76
  %v81 = vsub.f32 %v69, %v77
  %v82 = vsub.f32 %v70, %v78
  %v83 = vsub.f32 %v71, %v79
  %v84 = vsub.f32 %v72, %v80
  %v85 = vpack.c.bf16 %v82, %v81
  %v86 = vpack.c.bf16 %v84, %v83
  %s87 = scalar_lea.vmem %s4, 64
  %v88 = vld [vmem:[%s87] sm:$0xff]
  %v89 = vld [vmem:[%s87 + $0x8] sm:$0xff]
  %v90 = vld [vmem:[%s87 + $0x10] sm:$0xff]
  %v91 = vld [vmem:[%s87 + $0x18] sm:$0xff]
  %v92 = vpack.c.bf16 %v88, %v88
  %v93 = vpack.c.bf16 %v89, %v89
  %v94 = vpack.c.bf16 %v90, %v90
  %v95 = vpack.c.bf16 %v91, %v91
  %v96 = vunpack.c.l.bf16 %v92
  %v97 = vunpack.c.l.bf16 %v93
  %v98 = vunpack.c.l.bf16 %v94
  %v99 = vunpack.c.l.bf16 %v95
  %v100 = vsub.f32 %v88, %v96
  %v101 = vsub.f32 %v89, %v97
  %v102 = vsub.f32 %v90, %v98
  %v103 = vsub.f32 %v91, %v99
  %v104 = vpack.c.bf16 %v101, %v100
  %v105 = vpack.c.bf16 %v103, %v102
  %v106 = vld [vmem:[%s6] sm:$0x1]
  %v107 = vpack.c.bf16 %v106, %v106
  %v108 = vunpack.c.l.bf16 %v107
  %v109 = vsub.f32 %v106, %v108
  %v110 = vpack.c.bf16 %v109, %v109
  %v111 = vld [vmem:[%s3] sm:$0xff]
  %v112 = vld [vmem:[%s3 + $0x8] sm:$0xff]
  %v113 = vld [vmem:[%s3 + $0x10] sm:$0xff]
  %v114 = vld [vmem:[%s3 + $0x18] sm:$0xff]
  %v115 = vld [vmem:[%s5] sm:$0xff]
  %v116 = vld [vmem:[%s5 + $0x8] sm:$0xff]
  %v117 = vld [vmem:[%s5 + $0x10] sm:$0xff]
  %v118 = vld [vmem:[%s5 + $0x18] sm:$0xff]
  %s119 = scalar_lea.vmem %s5, 32
  %v120 = vld [vmem:[%s119] sm:$0xff]
  %v121 = vld [vmem:[%s119 + $0x8] sm:$0xff]
  %v122 = vld [vmem:[%s119 + $0x10] sm:$0xff]
  %v123 = vld [vmem:[%s119 + $0x18] sm:$0xff]
  %s124 = scalar_lea.vmem %s5, 64
  %v125 = vld [vmem:[%s124] sm:$0xff]
  %v126 = vld [vmem:[%s124 + $0x8] sm:$0xff]
  %v127 = vld [vmem:[%s124 + $0x10] sm:$0xff]
  %v128 = vld [vmem:[%s124 + $0x18] sm:$0xff]
  %v129 = vld [vmem:[#allocation2] sm:$0x1]
  %v130 = vld [vmem:[%s0] sm:$0xff]
  %v131 = vld [vmem:[%s0 + $0x8] sm:$0xff]
  %v132 = vand.u32 2147483647, %v130
  %vm133 = vcmp.le.f32.partialorder %v132, 0.7853982
  %vm134 = vcmp.lt.s32.totalorder %v130, 0
  %v135 = vand.u32 %v130, 2139095040
  %v136 = vshrl.u32 %v135, 23
  %v137 = vsub.s32 %v136, 127
  %v138 = vand.u32 2147483647, %v130
  %v139 = vand.u32 %v138, 8388607
  %v140 = vor.u32 %v139, 8388608
  %v141 = vsub.s32 0, %v140
  %v142 = vadd.s32 %v137, 1
  %vm143 = vcmp.gt.s32.totalorder %v142, 0
  %v144 = vsel %vm143, %v142, 0
  %v145 = vshrl.u32 %v144, 5
  %v146 = vand.u32 %v144, 31
  %v147 = vsub.s32 32, %v146
  %v148 = vshrl.u32 683565275, %v147
  %v149 = vshll.u32 683565275, %v146
  %v150 = vshrl.u32 2475754826, %v147
  %v151 = vor.u32 %v149, %v150
  %v152 = vshll.u32 2475754826, %v146
  %v153 = vshrl.u32 2131351028, %v147
  %v154 = vor.u32 %v152, %v153
  %v155 = vshll.u32 2131351028, %v146
  %v156 = vshrl.u32 2102212464, %v147
  %v157 = vor.u32 %v155, %v156
  %v158 = vshll.u32 2102212464, %v146
  %v159 = vshrl.u32 920167782, %v147
  %v160 = vor.u32 %v158, %v159
  %v161 = vshll.u32 920167782, %v146
  %v162 = vshrl.u32 1326507024, %v147
  %v163 = vor.u32 %v161, %v162
  %vm164 = vcmp.lt.s32.totalorder %v145, 1
  %vm165 = vcmp.lt.s32.totalorder %v145, 2
  %vm166 = vcmp.lt.s32.totalorder %v145, 3
  %vm167 = vcmp.lt.s32.totalorder %v145, 4
  %v168 = vsel %vm164, %v148, %v151
  %v169 = vsel %vm167, %v157, 2102212464
  %v170 = vsel %vm166, %v154, %v169
  %v171 = vsel %vm165, %v168, %v170
  %v172 = vsel %vm164, %v151, %v154
  %v173 = vsel %vm167, %v160, 920167782
  %v174 = vsel %vm166, %v157, %v173
  %v175 = vsel %vm165, %v172, %v174
  %v176 = vsel %vm164, %v154, %v157
  %v177 = vsel %vm167, %v163, 1326507024
  %v178 = vsel %vm166, %v160, %v177
  %v179 = vsel %vm165, %v176, %v178
  %v180 = vshll.u32 %v140, 8
  %v181 = vand.u32 %v180, 65535
  %v182 = vshrl.u32 %v180, 16
  %v183 = vand.u32 %v179, 65535
  %v184 = vshrl.u32 %v179, 16
  %v185 = vmul.u32 %v181, %v183
  %v186 = vmul.u32 %v181, %v184
  %v187 = vmul.u32 %v182, %v183
  %v188 = vmul.u32 %v182, %v184
  %v189 = vshll.u32 %v186, 16
  %v190 = vshrl.u32 %v186, 16
  %v191 = vshll.u32 %v187, 16
  %v192 = vshrl.u32 %v187, 16
  %vm193 = vc.u32 %v185, %v189
  %v194 = vsel %vm193, 1, 0
  %v195 = vadd.s32 %v185, %v189
  %v196 = vadd.s32 %v188, %v194
  %vm197 = vc.u32 %v195, %v191
  %v198 = vsel %vm197, 1, 0
  %v199 = vadd.s32 %v195, %v191
  %v200 = vadd.s32 %v196, %v198
  %v201 = vadd.s32 %v200, %v190
  %v202 = vadd.s32 %v201, %v192
  %v203 = vand.u32 %v180, 65535
  %v204 = vshrl.u32 %v180, 16
  %v205 = vand.u32 %v175, 65535
  %v206 = vshrl.u32 %v175, 16
  %v207 = vmul.u32 %v203, %v205
  %v208 = vmul.u32 %v203, %v206
  %v209 = vmul.u32 %v204, %v205
  %v210 = vmul.u32 %v204, %v206
  %v211 = vshll.u32 %v208, 16
  %v212 = vshrl.u32 %v208, 16
  %v213 = vshll.u32 %v209, 16
  %v214 = vshrl.u32 %v209, 16
  %vm215 = vc.u32 %v207, %v211
  %v216 = vsel %vm215, 1, 0
  %v217 = vadd.s32 %v207, %v211
  %v218 = vadd.s32 %v210, %v216
  %vm219 = vc.u32 %v217, %v213
  %v220 = vsel %vm219, 1, 0
  %v221 = vadd.s32 %v217, %v213
  %v222 = vadd.s32 %v218, %v220
  %v223 = vadd.s32 %v222, %v212
  %v224 = vadd.s32 %v223, %v214
  %v225 = vmul.u32 %v180, %v171
  %v226 = vadd.s32 %v202, %v221
  %vm227 = vc.u32 %v202, %v221
  %v228 = vadd.s32 %v224, 1
  %v229 = vsel %vm227, %v228, %v224
  %v230 = vadd.s32 %v225, %v229
  %v231 = vadd.s32 %v230, 536870912
  %v232 = vshrl.u32 %v231, 30
  %v233 = vshll.u32 %v232, 30
  %v234 = vsub.s32 %v230, %v233
  %vm235 = vcmp.lt.s32.totalorder %v234, 0
  %v236 = vsub.s32 0, %v234
  %v237 = vsel %vm235, %v236, %v234
  %v238 = vclz %v237
  %v239 = vsub.s32 %v238, 2
  %vm240 = vcmp.gt.s32.totalorder 0, %v239
  %v241 = vsel %vm240, 0, %v239
  %v242 = vsub.s32 32, %v241
  %v243 = vshll.u32 %v234, %v241
  %v244 = vshrl.u32 %v226, %v242
  %v245 = vor.u32 %v243, %v244
  %v246 = vsub.s32 4294967266, %v241
  %v247 = vadd.s32 %v246, 127
  %v248 = vshll.u32 %v247, 23
  %v249 = vor.u32 4788187, %v248
  %v250 = vand.u32 2147483647, %v249
  %v252 = vcvt.s32.f32 %v245
  %v253 = vmul.f32 %v252, %v250
  %v254 = vxor.u32 %v253, 2147483648
  %v255 = vsel %vm134, %v254, %v253
  %v256 = vsub.s32 4, %v232
  %v257 = vsel %vm134, %v256, %v232
  %v258 = vsel %vm133, %v130, %v255
  %v259 = vsel %vm133, 0, %v257
  %v260 = vmul.f32 %v258, %v258
  %v261 = vmul.f32 %v260, -0.001358992
  %v262 = vadd.f32 %v261, 0.041655596
  %v263 = vmul.f32 %v260, %v262
  %v264 = vadd.f32 %v263, -0.4999988
  %v265 = vmul.f32 %v260, %v264
  %v266 = vadd.f32 1.0, %v265
  %v267 = vmul.f32 %v258, %v258
  %v268 = vmul.f32 %v267, -0.00019511016
  %v269 = vadd.f32 %v268, 0.008332121
  %v270 = vmul.f32 %v267, %v269
  %v271 = vadd.f32 %v270, -0.16666654
  %v272 = vmul.f32 %v267, %v271
  %v273 = vadd.f32 %v272, 1.0
  %v274 = vmul.f32 %v273, %v258
  %vm275 = vweird.f32 %v130
  %v276 = vand.u32 %v259, 3
  %vm277 = vcmp.lt.s32.totalorder %v276, 2
  %vm278 = vcmp.eq.s32.totalorder %v276, 0
  %v279 = vxor.u32 %v274, 2147483648
  %v280 = vsel %vm278, %v266, %v279
  %vm281 = vcmp.eq.s32.totalorder %v276, 2
  %v282 = vxor.u32 %v266, 2147483648
  %v283 = vsel %vm281, %v282, %v274
  %v284 = vsel %vm277, %v280, %v283
  %v285 = vsel %vm275, nan, %v284
  %v286 = vand.u32 2147483647, %v131
  %vm287 = vcmp.le.f32.partialorder %v286, 0.7853982
  %vm288 = vcmp.lt.s32.totalorder %v131, 0
  %v289 = vand.u32 %v131, 2139095040
  %v290 = vshrl.u32 %v289, 23
  %v291 = vsub.s32 %v290, 127
  %v292 = vand.u32 2147483647, %v131
  %v293 = vand.u32 %v292, 8388607
  %v294 = vor.u32 %v293, 8388608
  %v295 = vsub.s32 0, %v294
  %v296 = vadd.s32 %v291, 1
  %vm297 = vcmp.gt.s32.totalorder %v296, 0
  %v298 = vsel %vm297, %v296, 0
  %v299 = vshrl.u32 %v298, 5
  %v300 = vand.u32 %v298, 31
  %v301 = vsub.s32 32, %v300
  %v302 = vshrl.u32 683565275, %v301
  %v303 = vshll.u32 683565275, %v300
  %v304 = vshrl.u32 2475754826, %v301
  %v305 = vor.u32 %v303, %v304
  %v306 = vshll.u32 2475754826, %v300
  %v307 = vshrl.u32 2131351028, %v301
  %v308 = vor.u32 %v306, %v307
  %v309 = vshll.u32 2131351028, %v300
  %v310 = vshrl.u32 2102212464, %v301
  %v311 = vor.u32 %v309, %v310
  %v312 = vshll.u32 2102212464, %v300
  %v313 = vshrl.u32 920167782, %v301
  %v314 = vor.u32 %v312, %v313
  %v315 = vshll.u32 920167782, %v300
  %v316 = vshrl.u32 1326507024, %v301
  %v317 = vor.u32 %v315, %v316
  %vm318 = vcmp.lt.s32.totalorder %v299, 1
  %vm319 = vcmp.lt.s32.totalorder %v299, 2
  %vm320 = vcmp.lt.s32.totalorder %v299, 3
  %vm321 = vcmp.lt.s32.totalorder %v299, 4
  %v322 = vsel %vm318, %v302, %v305
  %v323 = vsel %vm321, %v311, 2102212464
  %v324 = vsel %vm320, %v308, %v323
  %v325 = vsel %vm319, %v322, %v324
  %v326 = vsel %vm318, %v305, %v308
  %v327 = vsel %vm321, %v314, 920167782
  %v328 = vsel %vm320, %v311, %v327
  %v329 = vsel %vm319, %v326, %v328
  %v330 = vsel %vm318, %v308, %v311
  %v331 = vsel %vm321, %v317, 1326507024
  %v332 = vsel %vm320, %v314, %v331
  %v333 = vsel %vm319, %v330, %v332
  %v334 = vshll.u32 %v294, 8
  %v335 = vand.u32 %v334, 65535
  %v336 = vshrl.u32 %v334, 16
  %v337 = vand.u32 %v333, 65535
  %v338 = vshrl.u32 %v333, 16
  %v339 = vmul.u32 %v335, %v337
  %v340 = vmul.u32 %v335, %v338
  %v341 = vmul.u32 %v336, %v337
  %v342 = vmul.u32 %v336, %v338
  %v343 = vshll.u32 %v340, 16
  %v344 = vshrl.u32 %v340, 16
  %v345 = vshll.u32 %v341, 16
  %v346 = vshrl.u32 %v341, 16
  %vm347 = vc.u32 %v339, %v343
  %v348 = vsel %vm347, 1, 0
  %v349 = vadd.s32 %v339, %v343
  %v350 = vadd.s32 %v342, %v348
  %vm351 = vc.u32 %v349, %v345
  %v352 = vsel %vm351, 1, 0
  %v353 = vadd.s32 %v349, %v345
  %v354 = vadd.s32 %v350, %v352
  %v355 = vadd.s32 %v354, %v344
  %v356 = vadd.s32 %v355, %v346
  %v357 = vand.u32 %v334, 65535
  %v358 = vshrl.u32 %v334, 16
  %v359 = vand.u32 %v329, 65535
  %v360 = vshrl.u32 %v329, 16
  %v361 = vmul.u32 %v357, %v359
  %v362 = vmul.u32 %v357, %v360
  %v363 = vmul.u32 %v358, %v359
  %v364 = vmul.u32 %v358, %v360
  %v365 = vshll.u32 %v362, 16
  %v366 = vshrl.u32 %v362, 16
  %v367 = vshll.u32 %v363, 16
  %v368 = vshrl.u32 %v363, 16
  %vm369 = vc.u32 %v361, %v365
  %v370 = vsel %vm369, 1, 0
  %v371 = vadd.s32 %v361, %v365
  %v372 = vadd.s32 %v364, %v370
  %vm373 = vc.u32 %v371, %v367
  %v374 = vsel %vm373, 1, 0
  %v375 = vadd.s32 %v371, %v367
  %v376 = vadd.s32 %v372, %v374
  %v377 = vadd.s32 %v376, %v366
  %v378 = vadd.s32 %v377, %v368
  %v379 = vmul.u32 %v334, %v325
  %v380 = vadd.s32 %v356, %v375
  %vm381 = vc.u32 %v356, %v375
  %v382 = vadd.s32 %v378, 1
  %v383 = vsel %vm381, %v382, %v378
  %v384 = vadd.s32 %v379, %v383
  %v385 = vadd.s32 %v384, 536870912
  %v386 = vshrl.u32 %v385, 30
  %v387 = vshll.u32 %v386, 30
  %v388 = vsub.s32 %v384, %v387
  %vm389 = vcmp.lt.s32.totalorder %v388, 0
  %v390 = vsub.s32 0, %v388
  %v391 = vsel %vm389, %v390, %v388
  %v392 = vclz %v391
  %v393 = vsub.s32 %v392, 2
  %vm394 = vcmp.gt.s32.totalorder 0, %v393
  %v395 = vsel %vm394, 0, %v393
  %v396 = vsub.s32 32, %v395
  %v397 = vshll.u32 %v388, %v395
  %v398 = vshrl.u32 %v380, %v396
  %v399 = vor.u32 %v397, %v398
  %v400 = vsub.s32 4294967266, %v395
  %v401 = vadd.s32 %v400, 127
  %v402 = vshll.u32 %v401, 23
  %v403 = vor.u32 4788187, %v402
  %v404 = vand.u32 2147483647, %v403
  %v406 = vcvt.s32.f32 %v399
  %v407 = vmul.f32 %v406, %v404
  %v408 = vxor.u32 %v407, 2147483648
  %v409 = vsel %vm288, %v408, %v407
  %v410 = vsub.s32 4, %v386
  %v411 = vsel %vm288, %v410, %v386
  %v412 = vsel %vm287, %v131, %v409
  %v413 = vsel %vm287, 0, %v411
  %v414 = vmul.f32 %v412, %v412
  %v415 = vmul.f32 %v414, -0.001358992
  %v416 = vadd.f32 %v415, 0.041655596
  %v417 = vmul.f32 %v414, %v416
  %v418 = vadd.f32 %v417, -0.4999988
  %v419 = vmul.f32 %v414, %v418
  %v420 = vadd.f32 1.0, %v419
  %v421 = vmul.f32 %v412, %v412
  %v422 = vmul.f32 %v421, -0.00019511016
  %v423 = vadd.f32 %v422, 0.008332121
  %v424 = vmul.f32 %v421, %v423
  %v425 = vadd.f32 %v424, -0.16666654
  %v426 = vmul.f32 %v421, %v425
  %v427 = vadd.f32 %v426, 1.0
  %v428 = vmul.f32 %v427, %v412
  %vm429 = vweird.f32 %v131
  %v430 = vand.u32 %v413, 3
  %vm431 = vcmp.lt.s32.totalorder %v430, 2
  %vm432 = vcmp.eq.s32.totalorder %v430, 0
  %v433 = vxor.u32 %v428, 2147483648
  %v434 = vsel %vm432, %v420, %v433
  %vm435 = vcmp.eq.s32.totalorder %v430, 2
  %v436 = vxor.u32 %v420, 2147483648
  %v437 = vsel %vm435, %v436, %v428
  %v438 = vsel %vm431, %v434, %v437
  %v439 = vsel %vm429, nan, %v438
  %v440 = vpack.c.bf16 %v439, %v285
  %v441 = vunpack.c.l.bf16 %v440
  %v442 = vunpack.c.h.bf16 %v440
  %v443 = vsub.f32 %v285, %v441
  %v444 = vsub.f32 %v439, %v442
  %v445 = vpack.c.bf16 %v443, %v443
  %v446 = vpack.c.bf16 %v444, %v444
  %v451 = vunpack.c.l.b16 %v36
  %v452 = vunpack.c.l.b16 %v37
  %v453 = vunpack.c.l.b16 %v38
  %v454 = vunpack.c.l.b16 %v39
  %v455 = vpack.c.b16 %v452, %v451
  %v456 = vpack.c.b16 %v454, %v453
  %vm457 = vcmask 64512
  %v459 = vsel %vm457, %v455, 0
  %v462 = vsel %vm457, %v456, 0
  %vm464 = vcmask 1043456
  %v466 = vsel %vm464, %v445, 0
  %v469 = vsel %vm464, %v446, 0
  %471 = vmatpush.bf16.msra.mxu0 0
  %472 = vmatpush.bf16.msra.mxu0 0
  %473 = vmatpush.bf16.msra.mxu0 0
  %474 = vmatpush.bf16.msra.mxu0 0
  %475 = vmatpush.bf16.msra.mxu0 0
  %476 = vmatpush.bf16.msra.mxu0 0
  %477 = vmatpush.bf16.msra.mxu0 0
  %478 = vmatpush.bf16.msra.mxu0 %v466
  %479 = vmatmul.bf16.gmra.mxu0 %v459
  %v480 = vpop.f32.mrf.mxu0
  %v481 = vadd.f32 0.0, %v480
  %v482 = vpop.f32.mrf.mxu0
  %v483 = vadd.f32 0.0, %v482
  %484 = vmatmul.bf16.gmra.mxu0 %v462
  %v485 = vpop.f32.mrf.mxu0
  %v486 = vadd.f32 0.0, %v485
  %v487 = vpop.f32.mrf.mxu0
  %v488 = vadd.f32 0.0, %v487
  %489 = vdwg.mxu0
  %490 = vmatpush.bf16.msra.mxu0 0
  %491 = vmatpush.bf16.msra.mxu0 0
  %492 = vmatpush.bf16.msra.mxu0 0
  %493 = vmatpush.bf16.msra.mxu0 0
  %494 = vmatpush.bf16.msra.mxu0 0
  %495 = vmatpush.bf16.msra.mxu0 0
  %496 = vmatpush.bf16.msra.mxu0 0
  %497 = vmatpush.bf16.msra.mxu0 %v469
  %498 = vmatmul.bf16.gmra.mxu0 %v459
  %v499 = vpop.f32.mrf.mxu0
  %v500 = vadd.f32 0.0, %v499
  %v501 = vpop.f32.mrf.mxu0
  %v502 = vadd.f32 0.0, %v501
  %503 = vmatmul.bf16.gmra.mxu0 %v462
  %v504 = vpop.f32.mrf.mxu0
  %v505 = vadd.f32 0.0, %v504
  %v506 = vpop.f32.mrf.mxu0
  %v507 = vadd.f32 0.0, %v506
  %508 = vdwg.mxu0
  %v510 = vunpack.c.l.b16 %v440
  %v511 = vunpack.c.h.b16 %v440
  %v512 = vpack.c.b16 %v510, %v510
  %v513 = vpack.c.b16 %v511, %v511
  %v515 = vsel %vm464, %v512, 0
  %v518 = vsel %vm464, %v513, 0
  %520 = vmatpush.bf16.msra.mxu0 0
  %521 = vmatpush.bf16.msra.mxu0 0
  %522 = vmatpush.bf16.msra.mxu0 0
  %523 = vmatpush.bf16.msra.mxu0 0
  %524 = vmatpush.bf16.msra.mxu0 0
  %525 = vmatpush.bf16.msra.mxu0 0
  %526 = vmatpush.bf16.msra.mxu0 0
  %527 = vmatpush.bf16.msra.mxu0 %v515
  %528 = vmatmul.bf16.gmra.mxu0 %v459
  %v529 = vpop.f32.mrf.mxu0
  %v530 = vadd.f32 %v481, %v529
  %v531 = vpop.f32.mrf.mxu0
  %v532 = vadd.f32 %v483, %v531
  %533 = vmatmul.bf16.gmra.mxu0 %v462
  %v534 = vpop.f32.mrf.mxu0
  %v535 = vadd.f32 %v486, %v534
  %v536 = vpop.f32.mrf.mxu0
  %v537 = vadd.f32 %v488, %v536
  %538 = vdwg.mxu0
  %539 = vmatpush.bf16.msra.mxu0 0
  %540 = vmatpush.bf16.msra.mxu0 0
  %541 = vmatpush.bf16.msra.mxu0 0
  %542 = vmatpush.bf16.msra.mxu0 0
  %543 = vmatpush.bf16.msra.mxu0 0
  %544 = vmatpush.bf16.msra.mxu0 0
  %545 = vmatpush.bf16.msra.mxu0 0
  %546 = vmatpush.bf16.msra.mxu0 %v518
  %547 = vmatmul.bf16.gmra.mxu0 %v459
  %v548 = vpop.f32.mrf.mxu0
  %v549 = vadd.f32 %v500, %v548
  %v550 = vpop.f32.mrf.mxu0
  %v551 = vadd.f32 %v502, %v550
  %552 = vmatmul.bf16.gmra.mxu0 %v462
  %v553 = vpop.f32.mrf.mxu0
  %v554 = vadd.f32 %v505, %v553
  %v555 = vpop.f32.mrf.mxu0
  %v556 = vadd.f32 %v507, %v555
  %557 = vdwg.mxu0
  %v559 = vsel %vm457, %v48, 0
  %v562 = vsel %vm457, %v49, 0
  %564 = vmatpush.bf16.msra.mxu0 0
  %565 = vmatpush.bf16.msra.mxu0 0
  %566 = vmatpush.bf16.msra.mxu0 0
  %567 = vmatpush.bf16.msra.mxu0 0
  %568 = vmatpush.bf16.msra.mxu0 0
  %569 = vmatpush.bf16.msra.mxu0 0
  %570 = vmatpush.bf16.msra.mxu0 0
  %571 = vmatpush.bf16.msra.mxu0 %v515
  %572 = vmatmul.bf16.gmra.mxu0 %v559
  %v573 = vpop.f32.mrf.mxu0
  %v574 = vadd.f32 0.0, %v573
  %v575 = vpop.f32.mrf.mxu0
  %v576 = vadd.f32 0.0, %v575
  %577 = vmatmul.bf16.gmra.mxu0 %v562
  %v578 = vpop.f32.mrf.mxu0
  %v579 = vadd.f32 0.0, %v578
  %v580 = vpop.f32.mrf.mxu0
  %v581 = vadd.f32 0.0, %v580
  %582 = vdwg.mxu0
  %583 = vmatpush.bf16.msra.mxu0 0
  %584 = vmatpush.bf16.msra.mxu0 0
  %585 = vmatpush.bf16.msra.mxu0 0
  %586 = vmatpush.bf16.msra.mxu0 0
  %587 = vmatpush.bf16.msra.mxu0 0
  %588 = vmatpush.bf16.msra.mxu0 0
  %589 = vmatpush.bf16.msra.mxu0 0
  %590 = vmatpush.bf16.msra.mxu0 %v518
  %591 = vmatmul.bf16.gmra.mxu0 %v559
  %v592 = vpop.f32.mrf.mxu0
  %v593 = vadd.f32 0.0, %v592
  %v594 = vpop.f32.mrf.mxu0
  %v595 = vadd.f32 0.0, %v594
  %596 = vmatmul.bf16.gmra.mxu0 %v562
  %v597 = vpop.f32.mrf.mxu0
  %v598 = vadd.f32 0.0, %v597
  %v599 = vpop.f32.mrf.mxu0
  %v600 = vadd.f32 0.0, %v599
  %601 = vdwg.mxu0
  %v602 = vadd.f32 %v530, %v574
  %v603 = vadd.f32 %v549, %v593
  %v604 = vadd.f32 %v532, %v576
  %v605 = vadd.f32 %v551, %v595
  %v606 = vadd.f32 %v535, %v579
  %v607 = vadd.f32 %v554, %v598
  %v608 = vadd.f32 %v537, %v581
  %v609 = vadd.f32 %v556, %v600
  %611 = vset.pattern.permute.xlu0 0
  %612 = vperm.xlu0 %611, %v111
  %v613 = vpop.permute.xlu0 %612
  %616 = vset.pattern.permute.xlu0 0
  %617 = vperm.xlu0 %616, %v112
  %v618 = vpop.permute.xlu0 %617
  %621 = vset.pattern.permute.xlu0 0
  %622 = vperm.xlu0 %621, %v113
  %v623 = vpop.permute.xlu0 %622
  %626 = vset.pattern.permute.xlu0 0
  %627 = vperm.xlu0 %626, %v114
  %v628 = vpop.permute.xlu0 %627
  %v630 = vadd.f32 %v602, %v613
  %v631 = vadd.f32 %v603, %v613
  %v632 = vadd.f32 %v604, %v618
  %v633 = vadd.f32 %v605, %v618
  %v634 = vadd.f32 %v606, %v623
  %v635 = vadd.f32 %v607, %v623
  %v636 = vadd.f32 %v608, %v628
  %v637 = vadd.f32 %v609, %v628
  %v638 = vtanh.pop %v630
  %v639 = vtanh.pop %v631
  %v640 = vtanh.pop %v632
  %v641 = vtanh.pop %v633
  %v642 = vtanh.pop %v634
  %v643 = vtanh.pop %v635
  %v644 = vtanh.pop %v636
  %v645 = vtanh.pop %v637
  %v646 = vpack.c.bf16 %v639, %v638
  %v647 = vpack.c.bf16 %v641, %v640
  %v648 = vpack.c.bf16 %v643, %v642
  %v649 = vpack.c.bf16 %v645, %v644
  %v650 = vunpack.c.l.bf16 %v646
  %v651 = vunpack.c.h.bf16 %v646
  %v652 = vunpack.c.l.bf16 %v647
  %v653 = vunpack.c.h.bf16 %v647
  %v654 = vunpack.c.l.bf16 %v648
  %v655 = vunpack.c.h.bf16 %v648
  %v656 = vunpack.c.l.bf16 %v649
  %v657 = vunpack.c.h.bf16 %v649
  %v658 = vsub.f32 %v638, %v650
  %v659 = vsub.f32 %v639, %v651
  %v660 = vsub.f32 %v640, %v652
  %v661 = vsub.f32 %v641, %v653
  %v662 = vsub.f32 %v642, %v654
  %v663 = vsub.f32 %v643, %v655
  %v664 = vsub.f32 %v644, %v656
  %v665 = vsub.f32 %v645, %v657
  %v666 = vpack.c.bf16 %v660, %v658
  %v667 = vpack.c.bf16 %v661, %v659
  %v668 = vpack.c.bf16 %v664, %v662
  %v669 = vpack.c.bf16 %v665, %v663
  %v674 = vunpack.c.l.b16 %v54
  %v675 = vunpack.c.l.b16 %v55
  %v676 = vunpack.c.l.b16 %v56
  %v677 = vunpack.c.l.b16 %v57
  %v678 = vpack.c.b16 %v675, %v674
  %v679 = vpack.c.b16 %v677, %v676
  %vm680 = vcmask 261120
  %v682 = vsel %vm680, %v678, 0
  %v685 = vsel %vm680, %v679, 0
  %687 = vmatpush.bf16.msra.mxu0 0
  %688 = vmatpush.bf16.msra.mxu0 0
  %689 = vmatpush.bf16.msra.mxu0 0
  %690 = vmatpush.bf16.msra.mxu0 0
  %691 = vmatpush.bf16.msra.mxu0 0
  %692 = vmatpush.bf16.msra.mxu0 0
  %693 = vmatpush.bf16.msra.mxu0 %v668
  %694 = vmatpush.bf16.msra.mxu0 %v666
  %695 = vmatmul.bf16.gmra.mxu0 %v682
  %v696 = vpop.f32.mrf.mxu0
  %v697 = vadd.f32 0.0, %v696
  %v698 = vpop.f32.mrf.mxu0
  %v699 = vadd.f32 0.0, %v698
  %700 = vmatmul.bf16.gmra.mxu0 %v685
  %v701 = vpop.f32.mrf.mxu0
  %v702 = vadd.f32 0.0, %v701
  %v703 = vpop.f32.mrf.mxu0
  %v704 = vadd.f32 0.0, %v703
  %705 = vdwg.mxu0
  %706 = vmatpush.bf16.msra.mxu0 0
  %707 = vmatpush.bf16.msra.mxu0 0
  %708 = vmatpush.bf16.msra.mxu0 0
  %709 = vmatpush.bf16.msra.mxu0 0
  %710 = vmatpush.bf16.msra.mxu0 0
  %711 = vmatpush.bf16.msra.mxu0 0
  %712 = vmatpush.bf16.msra.mxu0 %v669
  %713 = vmatpush.bf16.msra.mxu0 %v667
  %714 = vmatmul.bf16.gmra.mxu0 %v682
  %v715 = vpop.f32.mrf.mxu0
  %v716 = vadd.f32 0.0, %v715
  %v717 = vpop.f32.mrf.mxu0
  %v718 = vadd.f32 0.0, %v717
  %719 = vmatmul.bf16.gmra.mxu0 %v685
  %v720 = vpop.f32.mrf.mxu0
  %v721 = vadd.f32 0.0, %v720
  %v722 = vpop.f32.mrf.mxu0
  %v723 = vadd.f32 0.0, %v722
  %724 = vdwg.mxu0
  %v729 = vunpack.c.l.b16 %v646
  %v730 = vunpack.c.h.b16 %v646
  %v731 = vunpack.c.l.b16 %v647
  %v732 = vunpack.c.h.b16 %v647
  %v733 = vunpack.c.l.b16 %v648
  %v734 = vunpack.c.h.b16 %v648
  %v735 = vunpack.c.l.b16 %v649
  %v736 = vunpack.c.h.b16 %v649
  %v737 = vpack.c.b16 %v731, %v729
  %v738 = vpack.c.b16 %v732, %v730
  %v739 = vpack.c.b16 %v735, %v733
  %v740 = vpack.c.b16 %v736, %v734
  %745 = vmatpush.bf16.msra.mxu0 0
  %746 = vmatpush.bf16.msra.mxu0 0
  %747 = vmatpush.bf16.msra.mxu0 0
  %748 = vmatpush.bf16.msra.mxu0 0
  %749 = vmatpush.bf16.msra.mxu0 0
  %750 = vmatpush.bf16.msra.mxu0 0
  %751 = vmatpush.bf16.msra.mxu0 %v739
  %752 = vmatpush.bf16.msra.mxu0 %v737
  %753 = vmatmul.bf16.gmra.mxu0 %v682
  %v754 = vpop.f32.mrf.mxu0
  %v755 = vadd.f32 %v697, %v754
  %v756 = vpop.f32.mrf.mxu0
  %v757 = vadd.f32 %v699, %v756
  %758 = vmatmul.bf16.gmra.mxu0 %v685
  %v759 = vpop.f32.mrf.mxu0
  %v760 = vadd.f32 %v702, %v759
  %v761 = vpop.f32.mrf.mxu0
  %v762 = vadd.f32 %v704, %v761
  %763 = vdwg.mxu0
  %764 = vmatpush.bf16.msra.mxu0 0
  %765 = vmatpush.bf16.msra.mxu0 0
  %766 = vmatpush.bf16.msra.mxu0 0
  %767 = vmatpush.bf16.msra.mxu0 0
  %768 = vmatpush.bf16.msra.mxu0 0
  %769 = vmatpush.bf16.msra.mxu0 0
  %770 = vmatpush.bf16.msra.mxu0 %v740
  %771 = vmatpush.bf16.msra.mxu0 %v738
  %772 = vmatmul.bf16.gmra.mxu0 %v682
  %v773 = vpop.f32.mrf.mxu0
  %v774 = vadd.f32 %v716, %v773
  %v775 = vpop.f32.mrf.mxu0
  %v776 = vadd.f32 %v718, %v775
  %777 = vmatmul.bf16.gmra.mxu0 %v685
  %v778 = vpop.f32.mrf.mxu0
  %v779 = vadd.f32 %v721, %v778
  %v780 = vpop.f32.mrf.mxu0
  %v781 = vadd.f32 %v723, %v780
  %782 = vdwg.mxu0
  %v784 = vsel %vm680, %v66, 0
  %v787 = vsel %vm680, %v67, 0
  %789 = vmatpush.bf16.msra.mxu0 0
  %790 = vmatpush.bf16.msra.mxu0 0
  %791 = vmatpush.bf16.msra.mxu0 0
  %792 = vmatpush.bf16.msra.mxu0 0
  %793 = vmatpush.bf16.msra.mxu0 0
  %794 = vmatpush.bf16.msra.mxu0 0
  %795 = vmatpush.bf16.msra.mxu0 %v739
  %796 = vmatpush.bf16.msra.mxu0 %v737
  %797 = vmatmul.bf16.gmra.mxu0 %v784
  %v798 = vpop.f32.mrf.mxu0
  %v799 = vadd.f32 0.0, %v798
  %v800 = vpop.f32.mrf.mxu0
  %v801 = vadd.f32 0.0, %v800
  %802 = vmatmul.bf16.gmra.mxu0 %v787
  %v803 = vpop.f32.mrf.mxu0
  %v804 = vadd.f32 0.0, %v803
  %v805 = vpop.f32.mrf.mxu0
  %v806 = vadd.f32 0.0, %v805
  %807 = vdwg.mxu0
  %808 = vmatpush.bf16.msra.mxu0 0
  %809 = vmatpush.bf16.msra.mxu0 0
  %810 = vmatpush.bf16.msra.mxu0 0
  %811 = vmatpush.bf16.msra.mxu0 0
  %812 = vmatpush.bf16.msra.mxu0 0
  %813 = vmatpush.bf16.msra.mxu0 0
  %814 = vmatpush.bf16.msra.mxu0 %v740
  %815 = vmatpush.bf16.msra.mxu0 %v738
  %816 = vmatmul.bf16.gmra.mxu0 %v784
  %v817 = vpop.f32.mrf.mxu0
  %v818 = vadd.f32 0.0, %v817
  %v819 = vpop.f32.mrf.mxu0
  %v820 = vadd.f32 0.0, %v819
  %821 = vmatmul.bf16.gmra.mxu0 %v787
  %v822 = vpop.f32.mrf.mxu0
  %v823 = vadd.f32 0.0, %v822
  %v824 = vpop.f32.mrf.mxu0
  %v825 = vadd.f32 0.0, %v824
  %826 = vdwg.mxu0
  %v827 = vadd.f32 %v755, %v799
  %v828 = vadd.f32 %v774, %v818
  %v829 = vadd.f32 %v757, %v801
  %v830 = vadd.f32 %v776, %v820
  %v831 = vadd.f32 %v760, %v804
  %v832 = vadd.f32 %v779, %v823
  %v833 = vadd.f32 %v762, %v806
  %v834 = vadd.f32 %v781, %v825
  %836 = vset.pattern.permute.xlu0 0
  %837 = vperm.xlu0 %836, %v115
  %v838 = vpop.permute.xlu0 %837
  %841 = vset.pattern.permute.xlu0 0
  %842 = vperm.xlu0 %841, %v116
  %v843 = vpop.permute.xlu0 %842
  %846 = vset.pattern.permute.xlu0 0
  %847 = vperm.xlu0 %846, %v117
  %v848 = vpop.permute.xlu0 %847
  %851 = vset.pattern.permute.xlu0 0
  %852 = vperm.xlu0 %851, %v118
  %v853 = vpop.permute.xlu0 %852
  %v855 = vadd.f32 %v827, %v838
  %v856 = vadd.f32 %v828, %v838
  %v857 = vadd.f32 %v829, %v843
  %v858 = vadd.f32 %v830, %v843
  %v859 = vadd.f32 %v831, %v848
  %v860 = vadd.f32 %v832, %v848
  %v861 = vadd.f32 %v833, %v853
  %v862 = vadd.f32 %v834, %v853
  %v863 = vtanh.pop %v855
  %v864 = vtanh.pop %v856
  %v865 = vtanh.pop %v857
  %v866 = vtanh.pop %v858
  %v867 = vtanh.pop %v859
  %v868 = vtanh.pop %v860
  %v869 = vtanh.pop %v861
  %v870 = vtanh.pop %v862
  %v871 = vpack.c.bf16 %v864, %v863
  %v872 = vpack.c.bf16 %v866, %v865
  %v873 = vpack.c.bf16 %v868, %v867
  %v874 = vpack.c.bf16 %v870, %v869
  %v875 = vunpack.c.l.bf16 %v871
  %v876 = vunpack.c.h.bf16 %v871
  %v877 = vunpack.c.l.bf16 %v872
  %v878 = vunpack.c.h.bf16 %v872
  %v879 = vunpack.c.l.bf16 %v873
  %v880 = vunpack.c.h.bf16 %v873
  %v881 = vunpack.c.l.bf16 %v874
  %v882 = vunpack.c.h.bf16 %v874
  %v883 = vsub.f32 %v863, %v875
  %v884 = vsub.f32 %v864, %v876
  %v885 = vsub.f32 %v865, %v877
  %v886 = vsub.f32 %v866, %v878
  %v887 = vsub.f32 %v867, %v879
  %v888 = vsub.f32 %v868, %v880
  %v889 = vsub.f32 %v869, %v881
  %v890 = vsub.f32 %v870, %v882
  %v891 = vpack.c.bf16 %v885, %v883
  %v892 = vpack.c.bf16 %v886, %v884
  %v893 = vpack.c.bf16 %v889, %v887
  %v894 = vpack.c.bf16 %v890, %v888
  %v899 = vunpack.c.l.b16 %v73
  %v900 = vunpack.c.l.b16 %v74
  %v901 = vunpack.c.l.b16 %v75
  %v902 = vunpack.c.l.b16 %v76
  %v903 = vpack.c.b16 %v900, %v899
  %v904 = vpack.c.b16 %v902, %v901
  %v906 = vsel %vm680, %v903, 0
  %v909 = vsel %vm680, %v904, 0
  %911 = vmatpush.bf16.msra.mxu0 0
  %912 = vmatpush.bf16.msra.mxu0 0
  %913 = vmatpush.bf16.msra.mxu0 0
  %914 = vmatpush.bf16.msra.mxu0 0
  %915 = vmatpush.bf16.msra.mxu0 0
  %916 = vmatpush.bf16.msra.mxu0 0
  %917 = vmatpush.bf16.msra.mxu0 %v893
  %918 = vmatpush.bf16.msra.mxu0 %v891
  %919 = vmatmul.bf16.gmra.mxu0 %v906
  %v920 = vpop.f32.mrf.mxu0
  %v921 = vadd.f32 0.0, %v920
  %v922 = vpop.f32.mrf.mxu0
  %v923 = vadd.f32 0.0, %v922
  %924 = vmatmul.bf16.gmra.mxu0 %v909
  %v925 = vpop.f32.mrf.mxu0
  %v926 = vadd.f32 0.0, %v925
  %v927 = vpop.f32.mrf.mxu0
  %v928 = vadd.f32 0.0, %v927
  %929 = vdwg.mxu0
  %930 = vmatpush.bf16.msra.mxu0 0
  %931 = vmatpush.bf16.msra.mxu0 0
  %932 = vmatpush.bf16.msra.mxu0 0
  %933 = vmatpush.bf16.msra.mxu0 0
  %934 = vmatpush.bf16.msra.mxu0 0
  %935 = vmatpush.bf16.msra.mxu0 0
  %936 = vmatpush.bf16.msra.mxu0 %v894
  %937 = vmatpush.bf16.msra.mxu0 %v892
  %938 = vmatmul.bf16.gmra.mxu0 %v906
  %v939 = vpop.f32.mrf.mxu0
  %v940 = vadd.f32 0.0, %v939
  %v941 = vpop.f32.mrf.mxu0
  %v942 = vadd.f32 0.0, %v941
  %943 = vmatmul.bf16.gmra.mxu0 %v909
  %v944 = vpop.f32.mrf.mxu0
  %v945 = vadd.f32 0.0, %v944
  %v946 = vpop.f32.mrf.mxu0
  %v947 = vadd.f32 0.0, %v946
  %948 = vdwg.mxu0
  %v953 = vunpack.c.l.b16 %v871
  %v954 = vunpack.c.h.b16 %v871
  %v955 = vunpack.c.l.b16 %v872
  %v956 = vunpack.c.h.b16 %v872
  %v957 = vunpack.c.l.b16 %v873
  %v958 = vunpack.c.h.b16 %v873
  %v959 = vunpack.c.l.b16 %v874
  %v960 = vunpack.c.h.b16 %v874
  %v961 = vpack.c.b16 %v955, %v953
  %v962 = vpack.c.b16 %v956, %v954
  %v963 = vpack.c.b16 %v959, %v957
  %v964 = vpack.c.b16 %v960, %v958
  %969 = vmatpush.bf16.msra.mxu0 0
  %970 = vmatpush.bf16.msra.mxu0 0
  %971 = vmatpush.bf16.msra.mxu0 0
  %972 = vmatpush.bf16.msra.mxu0 0
  %973 = vmatpush.bf16.msra.mxu0 0
  %974 = vmatpush.bf16.msra.mxu0 0
  %975 = vmatpush.bf16.msra.mxu0 %v963
  %976 = vmatpush.bf16.msra.mxu0 %v961
  %977 = vmatmul.bf16.gmra.mxu0 %v906
  %v978 = vpop.f32.mrf.mxu0
  %v979 = vadd.f32 %v921, %v978
  %v980 = vpop.f32.mrf.mxu0
  %v981 = vadd.f32 %v923, %v980
  %982 = vmatmul.bf16.gmra.mxu0 %v909
  %v983 = vpop.f32.mrf.mxu0
  %v984 = vadd.f32 %v926, %v983
  %v985 = vpop.f32.mrf.mxu0
  %v986 = vadd.f32 %v928, %v985
  %987 = vdwg.mxu0
  %988 = vmatpush.bf16.msra.mxu0 0
  %989 = vmatpush.bf16.msra.mxu0 0
  %990 = vmatpush.bf16.msra.mxu0 0
  %991 = vmatpush.bf16.msra.mxu0 0
  %992 = vmatpush.bf16.msra.mxu0 0
  %993 = vmatpush.bf16.msra.mxu0 0
  %994 = vmatpush.bf16.msra.mxu0 %v964
  %995 = vmatpush.bf16.msra.mxu0 %v962
  %996 = vmatmul.bf16.gmra.mxu0 %v906
  %v997 = vpop.f32.mrf.mxu0
  %v998 = vadd.f32 %v940, %v997
  %v999 = vpop.f32.mrf.mxu0
  %v1000 = vadd.f32 %v942, %v999
  %1001 = vmatmul.bf16.gmra.mxu0 %v909
  %v1002 = vpop.f32.mrf.mxu0
  %v1003 = vadd.f32 %v945, %v1002
  %v1004 = vpop.f32.mrf.mxu0
  %v1005 = vadd.f32 %v947, %v1004
  %1006 = vdwg.mxu0
  %v1008 = vsel %vm680, %v85, 0
  %v1011 = vsel %vm680, %v86, 0
  %1013 = vmatpush.bf16.msra.mxu0 0
  %1014 = vmatpush.bf16.msra.mxu0 0
  %1015 = vmatpush.bf16.msra.mxu0 0
  %1016 = vmatpush.bf16.msra.mxu0 0
  %1017 = vmatpush.bf16.msra.mxu0 0
  %1018 = vmatpush.bf16.msra.mxu0 0
  %1019 = vmatpush.bf16.msra.mxu0 %v963
  %1020 = vmatpush.bf16.msra.mxu0 %v961
  %1021 = vmatmul.bf16.gmra.mxu0 %v1008
  %v1022 = vpop.f32.mrf.mxu0
  %v1023 = vadd.f32 0.0, %v1022
  %v1024 = vpop.f32.mrf.mxu0
  %v1025 = vadd.f32 0.0, %v1024
  %1026 = vmatmul.bf16.gmra.mxu0 %v1011
  %v1027 = vpop.f32.mrf.mxu0
  %v1028 = vadd.f32 0.0, %v1027
  %v1029 = vpop.f32.mrf.mxu0
  %v1030 = vadd.f32 0.0, %v1029
  %1031 = vdwg.mxu0
  %1032 = vmatpush.bf16.msra.mxu0 0
  %1033 = vmatpush.bf16.msra.mxu0 0
  %1034 = vmatpush.bf16.msra.mxu0 0
  %1035 = vmatpush.bf16.msra.mxu0 0
  %1036 = vmatpush.bf16.msra.mxu0 0
  %1037 = vmatpush.bf16.msra.mxu0 0
  %1038 = vmatpush.bf16.msra.mxu0 %v964
  %1039 = vmatpush.bf16.msra.mxu0 %v962
  %1040 = vmatmul.bf16.gmra.mxu0 %v1008
  %v1041 = vpop.f32.mrf.mxu0
  %v1042 = vadd.f32 0.0, %v1041
  %v1043 = vpop.f32.mrf.mxu0
  %v1044 = vadd.f32 0.0, %v1043
  %1045 = vmatmul.bf16.gmra.mxu0 %v1011
  %v1046 = vpop.f32.mrf.mxu0
  %v1047 = vadd.f32 0.0, %v1046
  %v1048 = vpop.f32.mrf.mxu0
  %v1049 = vadd.f32 0.0, %v1048
  %1050 = vdwg.mxu0
  %v1051 = vadd.f32 %v979, %v1023
  %v1052 = vadd.f32 %v998, %v1042
  %v1053 = vadd.f32 %v981, %v1025
  %v1054 = vadd.f32 %v1000, %v1044
  %v1055 = vadd.f32 %v984, %v1028
  %v1056 = vadd.f32 %v1003, %v1047
  %v1057 = vadd.f32 %v986, %v1030
  %v1058 = vadd.f32 %v1005, %v1049
  %1060 = vset.pattern.permute.xlu0 0
  %1061 = vperm.xlu0 %1060, %v120
  %v1062 = vpop.permute.xlu0 %1061
  %1065 = vset.pattern.permute.xlu0 0
  %1066 = vperm.xlu0 %1065, %v121
  %v1067 = vpop.permute.xlu0 %1066
  %1070 = vset.pattern.permute.xlu0 0
  %1071 = vperm.xlu0 %1070, %v122
  %v1072 = vpop.permute.xlu0 %1071
  %1075 = vset.pattern.permute.xlu0 0
  %1076 = vperm.xlu0 %1075, %v123
  %v1077 = vpop.permute.xlu0 %1076
  %v1079 = vadd.f32 %v1051, %v1062
  %v1080 = vadd.f32 %v1052, %v1062
  %v1081 = vadd.f32 %v1053, %v1067
  %v1082 = vadd.f32 %v1054, %v1067
  %v1083 = vadd.f32 %v1055, %v1072
  %v1084 = vadd.f32 %v1056, %v1072
  %v1085 = vadd.f32 %v1057, %v1077
  %v1086 = vadd.f32 %v1058, %v1077
  %v1087 = vtanh.pop %v1079
  %v1088 = vtanh.pop %v1080
  %v1089 = vtanh.pop %v1081
  %v1090 = vtanh.pop %v1082
  %v1091 = vtanh.pop %v1083
  %v1092 = vtanh.pop %v1084
  %v1093 = vtanh.pop %v1085
  %v1094 = vtanh.pop %v1086
  %v1095 = vpack.c.bf16 %v1088, %v1087
  %v1096 = vpack.c.bf16 %v1090, %v1089
  %v1097 = vpack.c.bf16 %v1092, %v1091
  %v1098 = vpack.c.bf16 %v1094, %v1093
  %v1099 = vunpack.c.l.bf16 %v1095
  %v1100 = vunpack.c.h.bf16 %v1095
  %v1101 = vunpack.c.l.bf16 %v1096
  %v1102 = vunpack.c.h.bf16 %v1096
  %v1103 = vunpack.c.l.bf16 %v1097
  %v1104 = vunpack.c.h.bf16 %v1097
  %v1105 = vunpack.c.l.bf16 %v1098
  %v1106 = vunpack.c.h.bf16 %v1098
  %v1107 = vsub.f32 %v1087, %v1099
  %v1108 = vsub.f32 %v1088, %v1100
  %v1109 = vsub.f32 %v1089, %v1101
  %v1110 = vsub.f32 %v1090, %v1102
  %v1111 = vsub.f32 %v1091, %v1103
  %v1112 = vsub.f32 %v1092, %v1104
  %v1113 = vsub.f32 %v1093, %v1105
  %v1114 = vsub.f32 %v1094, %v1106
  %v1115 = vpack.c.bf16 %v1109, %v1107
  %v1116 = vpack.c.bf16 %v1110, %v1108
  %v1117 = vpack.c.bf16 %v1113, %v1111
  %v1118 = vpack.c.bf16 %v1114, %v1112
  %v1123 = vunpack.c.l.b16 %v92
  %v1124 = vunpack.c.l.b16 %v93
  %v1125 = vunpack.c.l.b16 %v94
  %v1126 = vunpack.c.l.b16 %v95
  %v1127 = vpack.c.b16 %v1124, %v1123
  %v1128 = vpack.c.b16 %v1126, %v1125
  %v1130 = vsel %vm680, %v1127, 0
  %v1133 = vsel %vm680, %v1128, 0
  %1135 = vmatpush.bf16.msra.mxu0 0
  %1136 = vmatpush.bf16.msra.mxu0 0
  %1137 = vmatpush.bf16.msra.mxu0 0
  %1138 = vmatpush.bf16.msra.mxu0 0
  %1139 = vmatpush.bf16.msra.mxu0 0
  %1140 = vmatpush.bf16.msra.mxu0 0
  %1141 = vmatpush.bf16.msra.mxu0 %v1117
  %1142 = vmatpush.bf16.msra.mxu0 %v1115
  %1143 = vmatmul.bf16.gmra.mxu0 %v1130
  %v1144 = vpop.f32.mrf.mxu0
  %v1145 = vadd.f32 0.0, %v1144
  %v1146 = vpop.f32.mrf.mxu0
  %v1147 = vadd.f32 0.0, %v1146
  %1148 = vmatmul.bf16.gmra.mxu0 %v1133
  %v1149 = vpop.f32.mrf.mxu0
  %v1150 = vadd.f32 0.0, %v1149
  %v1151 = vpop.f32.mrf.mxu0
  %v1152 = vadd.f32 0.0, %v1151
  %1153 = vdwg.mxu0
  %1154 = vmatpush.bf16.msra.mxu0 0
  %1155 = vmatpush.bf16.msra.mxu0 0
  %1156 = vmatpush.bf16.msra.mxu0 0
  %1157 = vmatpush.bf16.msra.mxu0 0
  %1158 = vmatpush.bf16.msra.mxu0 0
  %1159 = vmatpush.bf16.msra.mxu0 0
  %1160 = vmatpush.bf16.msra.mxu0 %v1118
  %1161 = vmatpush.bf16.msra.mxu0 %v1116
  %1162 = vmatmul.bf16.gmra.mxu0 %v1130
  %v1163 = vpop.f32.mrf.mxu0
  %v1164 = vadd.f32 0.0, %v1163
  %v1165 = vpop.f32.mrf.mxu0
  %v1166 = vadd.f32 0.0, %v1165
  %1167 = vmatmul.bf16.gmra.mxu0 %v1133
  %v1168 = vpop.f32.mrf.mxu0
  %v1169 = vadd.f32 0.0, %v1168
  %v1170 = vpop.f32.mrf.mxu0
  %v1171 = vadd.f32 0.0, %v1170
  %1172 = vdwg.mxu0
  %v1177 = vunpack.c.l.b16 %v1095
  %v1178 = vunpack.c.h.b16 %v1095
  %v1179 = vunpack.c.l.b16 %v1096
  %v1180 = vunpack.c.h.b16 %v1096
  %v1181 = vunpack.c.l.b16 %v1097
  %v1182 = vunpack.c.h.b16 %v1097
  %v1183 = vunpack.c.l.b16 %v1098
  %v1184 = vunpack.c.h.b16 %v1098
  %v1185 = vpack.c.b16 %v1179, %v1177
  %v1186 = vpack.c.b16 %v1180, %v1178
  %v1187 = vpack.c.b16 %v1183, %v1181
  %v1188 = vpack.c.b16 %v1184, %v1182
  %1193 = vmatpush.bf16.msra.mxu0 0
  %1194 = vmatpush.bf16.msra.mxu0 0
  %1195 = vmatpush.bf16.msra.mxu0 0
  %1196 = vmatpush.bf16.msra.mxu0 0
  %1197 = vmatpush.bf16.msra.mxu0 0
  %1198 = vmatpush.bf16.msra.mxu0 0
  %1199 = vmatpush.bf16.msra.mxu0 %v1187
  %1200 = vmatpush.bf16.msra.mxu0 %v1185
  %1201 = vmatmul.bf16.gmra.mxu0 %v1130
  %v1202 = vpop.f32.mrf.mxu0
  %v1203 = vadd.f32 %v1145, %v1202
  %v1204 = vpop.f32.mrf.mxu0
  %v1205 = vadd.f32 %v1147, %v1204
  %1206 = vmatmul.bf16.gmra.mxu0 %v1133
  %v1207 = vpop.f32.mrf.mxu0
  %v1208 = vadd.f32 %v1150, %v1207
  %v1209 = vpop.f32.mrf.mxu0
  %v1210 = vadd.f32 %v1152, %v1209
  %1211 = vdwg.mxu0
  %1212 = vmatpush.bf16.msra.mxu0 0
  %1213 = vmatpush.bf16.msra.mxu0 0
  %1214 = vmatpush.bf16.msra.mxu0 0
  %1215 = vmatpush.bf16.msra.mxu0 0
  %1216 = vmatpush.bf16.msra.mxu0 0
  %1217 = vmatpush.bf16.msra.mxu0 0
  %1218 = vmatpush.bf16.msra.mxu0 %v1188
  %1219 = vmatpush.bf16.msra.mxu0 %v1186
  %1220 = vmatmul.bf16.gmra.mxu0 %v1130
  %v1221 = vpop.f32.mrf.mxu0
  %v1222 = vadd.f32 %v1164, %v1221
  %v1223 = vpop.f32.mrf.mxu0
  %v1224 = vadd.f32 %v1166, %v1223
  %1225 = vmatmul.bf16.gmra.mxu0 %v1133
  %v1226 = vpop.f32.mrf.mxu0
  %v1227 = vadd.f32 %v1169, %v1226
  %v1228 = vpop.f32.mrf.mxu0
  %v1229 = vadd.f32 %v1171, %v1228
  %1230 = vdwg.mxu0
  %v1232 = vsel %vm680, %v104, 0
  %v1235 = vsel %vm680, %v105, 0
  %1237 = vmatpush.bf16.msra.mxu0 0
  %1238 = vmatpush.bf16.msra.mxu0 0
  %1239 = vmatpush.bf16.msra.mxu0 0
  %1240 = vmatpush.bf16.msra.mxu0 0
  %1241 = vmatpush.bf16.msra.mxu0 0
  %1242 = vmatpush.bf16.msra.mxu0 0
  %1243 = vmatpush.bf16.msra.mxu0 %v1187
  %1244 = vmatpush.bf16.msra.mxu0 %v1185
  %1245 = vmatmul.bf16.gmra.mxu0 %v1232
  %v1246 = vpop.f32.mrf.mxu0
  %v1247 = vadd.f32 0.0, %v1246
  %v1248 = vpop.f32.mrf.mxu0
  %v1249 = vadd.f32 0.0, %v1248
  %1250 = vmatmul.bf16.gmra.mxu0 %v1235
  %v1251 = vpop.f32.mrf.mxu0
  %v1252 = vadd.f32 0.0, %v1251
  %v1253 = vpop.f32.mrf.mxu0
  %v1254 = vadd.f32 0.0, %v1253
  %1255 = vdwg.mxu0
  %1256 = vmatpush.bf16.msra.mxu0 0
  %1257 = vmatpush.bf16.msra.mxu0 0
  %1258 = vmatpush.bf16.msra.mxu0 0
  %1259 = vmatpush.bf16.msra.mxu0 0
  %1260 = vmatpush.bf16.msra.mxu0 0
  %1261 = vmatpush.bf16.msra.mxu0 0
  %1262 = vmatpush.bf16.msra.mxu0 %v1188
  %1263 = vmatpush.bf16.msra.mxu0 %v1186
  %1264 = vmatmul.bf16.gmra.mxu0 %v1232
  %v1265 = vpop.f32.mrf.mxu0
  %v1266 = vadd.f32 0.0, %v1265
  %v1267 = vpop.f32.mrf.mxu0
  %v1268 = vadd.f32 0.0, %v1267
  %1269 = vmatmul.bf16.gmra.mxu0 %v1235
  %v1270 = vpop.f32.mrf.mxu0
  %v1271 = vadd.f32 0.0, %v1270
  %v1272 = vpop.f32.mrf.mxu0
  %v1273 = vadd.f32 0.0, %v1272
  %1274 = vdwg.mxu0
  %v1275 = vadd.f32 %v1203, %v1247
  %v1276 = vadd.f32 %v1222, %v1266
  %v1277 = vadd.f32 %v1205, %v1249
  %v1278 = vadd.f32 %v1224, %v1268
  %v1279 = vadd.f32 %v1208, %v1252
  %v1280 = vadd.f32 %v1227, %v1271
  %v1281 = vadd.f32 %v1210, %v1254
  %v1282 = vadd.f32 %v1229, %v1273
  %1284 = vset.pattern.permute.xlu0 0
  %1285 = vperm.xlu0 %1284, %v125
  %v1286 = vpop.permute.xlu0 %1285
  %1289 = vset.pattern.permute.xlu0 0
  %1290 = vperm.xlu0 %1289, %v126
  %v1291 = vpop.permute.xlu0 %1290
  %1294 = vset.pattern.permute.xlu0 0
  %1295 = vperm.xlu0 %1294, %v127
  %v1296 = vpop.permute.xlu0 %1295
  %1299 = vset.pattern.permute.xlu0 0
  %1300 = vperm.xlu0 %1299, %v128
  %v1301 = vpop.permute.xlu0 %1300
  %v1303 = vadd.f32 %v1275, %v1286
  %v1304 = vadd.f32 %v1276, %v1286
  %v1305 = vadd.f32 %v1277, %v1291
  %v1306 = vadd.f32 %v1278, %v1291
  %v1307 = vadd.f32 %v1279, %v1296
  %v1308 = vadd.f32 %v1280, %v1296
  %v1309 = vadd.f32 %v1281, %v1301
  %v1310 = vadd.f32 %v1282, %v1301
  %v1311 = vtanh.pop %v1303
  %v1312 = vtanh.pop %v1304
  %v1313 = vtanh.pop %v1305
  %v1314 = vtanh.pop %v1306
  %v1315 = vtanh.pop %v1307
  %v1316 = vtanh.pop %v1308
  %v1317 = vtanh.pop %v1309
  %v1318 = vtanh.pop %v1310
  %v1319 = vpack.c.bf16 %v1312, %v1311
  %v1320 = vpack.c.bf16 %v1314, %v1313
  %v1321 = vpack.c.bf16 %v1316, %v1315
  %v1322 = vpack.c.bf16 %v1318, %v1317
  %v1323 = vunpack.c.l.bf16 %v1319
  %v1324 = vunpack.c.h.bf16 %v1319
  %v1325 = vunpack.c.l.bf16 %v1320
  %v1326 = vunpack.c.h.bf16 %v1320
  %v1327 = vunpack.c.l.bf16 %v1321
  %v1328 = vunpack.c.h.bf16 %v1321
  %v1329 = vunpack.c.l.bf16 %v1322
  %v1330 = vunpack.c.h.bf16 %v1322
  %v1331 = vsub.f32 %v1311, %v1323
  %v1332 = vsub.f32 %v1312, %v1324
  %v1333 = vsub.f32 %v1313, %v1325
  %v1334 = vsub.f32 %v1314, %v1326
  %v1335 = vsub.f32 %v1315, %v1327
  %v1336 = vsub.f32 %v1316, %v1328
  %v1337 = vsub.f32 %v1317, %v1329
  %v1338 = vsub.f32 %v1318, %v1330
  %v1339 = vpack.c.bf16 %v1333, %v1331
  %v1340 = vpack.c.bf16 %v1334, %v1332
  %v1341 = vpack.c.bf16 %v1337, %v1335
  %v1342 = vpack.c.bf16 %v1338, %v1336
  %v1344 = vsel %vm680, %v107, 0
  %1346 = vmatpush.bf16.msra.mxu0 0
  %1347 = vmatpush.bf16.msra.mxu0 0
  %1348 = vmatpush.bf16.msra.mxu0 0
  %1349 = vmatpush.bf16.msra.mxu0 0
  %1350 = vmatpush.bf16.msra.mxu0 0
  %1351 = vmatpush.bf16.msra.mxu0 0
  %1352 = vmatpush.bf16.msra.mxu0 %v1341
  %1353 = vmatpush.bf16.msra.mxu0 %v1339
  %1354 = vmatmul.bf16.gmra.mxu0 %v1344
  %v1355 = vpop.f32.mrf.mxu0
  %v1356 = vadd.f32 0.0, %v1355
  %v1357 = vpop.f32.mrf.mxu0
  %1358 = vdwg.mxu0
  %1359 = vmatpush.bf16.msra.mxu0 0
  %1360 = vmatpush.bf16.msra.mxu0 0
  %1361 = vmatpush.bf16.msra.mxu0 0
  %1362 = vmatpush.bf16.msra.mxu0 0
  %1363 = vmatpush.bf16.msra.mxu0 0
  %1364 = vmatpush.bf16.msra.mxu0 0
  %1365 = vmatpush.bf16.msra.mxu0 %v1342
  %1366 = vmatpush.bf16.msra.mxu0 %v1340
  %1367 = vmatmul.bf16.gmra.mxu0 %v1344
  %v1368 = vpop.f32.mrf.mxu0
  %v1369 = vadd.f32 0.0, %v1368
  %v1370 = vpop.f32.mrf.mxu0
  %1371 = vdwg.mxu0
  %v1376 = vunpack.c.l.b16 %v1319
  %v1377 = vunpack.c.h.b16 %v1319
  %v1378 = vunpack.c.l.b16 %v1320
  %v1379 = vunpack.c.h.b16 %v1320
  %v1380 = vunpack.c.l.b16 %v1321
  %v1381 = vunpack.c.h.b16 %v1321
  %v1382 = vunpack.c.l.b16 %v1322
  %v1383 = vunpack.c.h.b16 %v1322
  %v1384 = vpack.c.b16 %v1378, %v1376
  %v1385 = vpack.c.b16 %v1379, %v1377
  %v1386 = vpack.c.b16 %v1382, %v1380
  %v1387 = vpack.c.b16 %v1383, %v1381
  %1392 = vmatpush.bf16.msra.mxu0 0
  %1393 = vmatpush.bf16.msra.mxu0 0
  %1394 = vmatpush.bf16.msra.mxu0 0
  %1395 = vmatpush.bf16.msra.mxu0 0
  %1396 = vmatpush.bf16.msra.mxu0 0
  %1397 = vmatpush.bf16.msra.mxu0 0
  %1398 = vmatpush.bf16.msra.mxu0 %v1386
  %1399 = vmatpush.bf16.msra.mxu0 %v1384
  %1400 = vmatmul.bf16.gmra.mxu0 %v1344
  %v1401 = vpop.f32.mrf.mxu0
  %v1402 = vadd.f32 %v1356, %v1401
  %v1403 = vpop.f32.mrf.mxu0
  %1404 = vdwg.mxu0
  %1405 = vmatpush.bf16.msra.mxu0 0
  %1406 = vmatpush.bf16.msra.mxu0 0
  %1407 = vmatpush.bf16.msra.mxu0 0
  %1408 = vmatpush.bf16.msra.mxu0 0
  %1409 = vmatpush.bf16.msra.mxu0 0
  %1410 = vmatpush.bf16.msra.mxu0 0
  %1411 = vmatpush.bf16.msra.mxu0 %v1387
  %1412 = vmatpush.bf16.msra.mxu0 %v1385
  %1413 = vmatmul.bf16.gmra.mxu0 %v1344
  %v1414 = vpop.f32.mrf.mxu0
  %v1415 = vadd.f32 %v1369, %v1414
  %v1416 = vpop.f32.mrf.mxu0
  %1417 = vdwg.mxu0
  %v1419 = vsel %vm680, %v110, 0
  %1421 = vmatpush.bf16.msra.mxu0 0
  %1422 = vmatpush.bf16.msra.mxu0 0
  %1423 = vmatpush.bf16.msra.mxu0 0
  %1424 = vmatpush.bf16.msra.mxu0 0
  %1425 = vmatpush.bf16.msra.mxu0 0
  %1426 = vmatpush.bf16.msra.mxu0 0
  %1427 = vmatpush.bf16.msra.mxu0 %v1386
  %1428 = vmatpush.bf16.msra.mxu0 %v1384
  %1429 = vmatmul.bf16.gmra.mxu0 %v1419
  %v1430 = vpop.f32.mrf.mxu0
  %v1431 = vadd.f32 0.0, %v1430
  %v1432 = vpop.f32.mrf.mxu0
  %1433 = vdwg.mxu0
  %1434 = vmatpush.bf16.msra.mxu0 0
  %1435 = vmatpush.bf16.msra.mxu0 0
  %1436 = vmatpush.bf16.msra.mxu0 0
  %1437 = vmatpush.bf16.msra.mxu0 0
  %1438 = vmatpush.bf16.msra.mxu0 0
  %1439 = vmatpush.bf16.msra.mxu0 0
  %1440 = vmatpush.bf16.msra.mxu0 %v1387
  %1441 = vmatpush.bf16.msra.mxu0 %v1385
  %1442 = vmatmul.bf16.gmra.mxu0 %v1419
  %v1443 = vpop.f32.mrf.mxu0
  %v1444 = vadd.f32 0.0, %v1443
  %v1445 = vpop.f32.mrf.mxu0
  %1446 = vdwg.mxu0
  %v1447 = vadd.f32 %v1402, %v1431
  %v1448 = vadd.f32 %v1415, %v1444
  %1450 = vset.pattern.permute.xlu0 0
  %1451 = vperm.xlu0 %1450, %v129
  %v1452 = vpop.permute.xlu0 %1451
  %v1454 = vperm.slane %v1452, 0
  %v1455 = vadd.f32 %v1447, %v1454
  %v1456 = vadd.f32 %v1448, %v1454
  %v1457 = vld [vmem:[%s1] sm:$0x3]
  %v1458 = vmax.f32 %v1455, 0.0
  %v1459 = vmax.f32 %v1456, 0.0
  %v1462 = vrot.slane %v1459, 7
  %vm1463 = vcmask 1040384
  %v1464 = vsel %vm1463, %v1458, %v1462
  %v1466 = vmin.f32 %v1457, %v1464
  %v1467 = vlaneseq
  %vm1468 = vcmp.ge.s32.totalorder %v1467, 0
  %vm1469 = vcmp.lt.s32.totalorder %v1467, 256
  %vm1470 = vmand %vm1468, %vm1469
  %1471 = vst.msk [vmem:[%s8] sm:$0x3] %vm1470, %v1466
  // Predicated region
  $region34: #{meta_surrogate_h_forward.1} parent=0 // pred_check
    _
  $region35: #{meta_surrogate_h_forward.1} parent=0 // pred_check_branch
    %1473 = sbr.rel (0) target = $region37
  $region36: #{meta_surrogate_h_forward.1} parent=0 // pred_region
    _
  $region37: #{meta_surrogate_h_forward.1} parent=0 // pred_fallthru
    _
  // Predicated region
  $region38: #{meta_surrogate_h_forward.1} parent=0 // pred_check
    _
  $region39: #{meta_surrogate_h_forward.1} parent=0 // pred_check_branch
    %1475 = sbr.rel (0) target = $region41
  $region40: #{meta_surrogate_h_forward.1} parent=0 // pred_region
    _
  $region41: #{meta_surrogate_h_forward.1} parent=0 // pred_fallthru
    _

</llo_original>
